<compile_context>
chip_gen: v7x
topology: tpu7x:2x2x1
jax: 0.10.0
libtpu: 0.0.40
codegen_flags: <defaults>
</compile_context>

<pallas_src>
import functools

import numpy as np
import jax
import jax.numpy as jnp
from jax.experimental import pallas as pl
from jax.experimental.pallas import tpu as pltpu

COUT_PAD = 128      # lane-dense output width (vreg lane count)
TM_TARGET = 2048    # rows per grid step at real resolutions (amortizes step overhead)
TM_MIN = 256        # never shrink tiles below this just to manufacture grid steps


def _round_up(x, m):
    return (x + m - 1) // m * m


def _pick_tm(M):
    """Row-tile size: big enough to amortize per-step overhead, small enough that the
    grid exposes >=4 steps (for v7x's two TensorCores) whenever M permits."""
    tm = min(TM_TARGET, _round_up(M, 16))
    if M > 2 * TM_MIN:
        tm = min(tm, max(_round_up(pl.cdiv(M, 4), 16), TM_MIN))
    return tm


# ------------------------------------------------------------------ Pallas kernel
def _gemm_bias_act_kernel(a_ref, w_ref, b_ref, o_ref, *, act):
    # a: (TM, K) bf16 (streamed), w: (K, 128) bf16 (VMEM-resident), b: (1, 128) f32.
    acc = jnp.dot(a_ref[...], w_ref[...], preferred_element_type=jnp.float32)
    acc = acc + b_ref[...]
    if act == "relu":
        acc = jnp.maximum(acc, 0.0)
    elif act == "tanh":
        acc = jnp.tanh(acc)
    o_ref[...] = acc.astype(o_ref.dtype)


def gemm_bias_act(a_bf16, w_bf16, b_f32, act, out_dtype):
    """Fused (im2col-patches @ weights) + bias + activation, tiled over rows (M)."""
    M, K = a_bf16.shape
    assert w_bf16.shape == (K, COUT_PAD)

    tm = _pick_tm(M)
    grid_m = pl.cdiv(M, tm)
    m_out = M
    if grid_m == 1 and tm > M:
        # Degenerate tiny-M case (M < 16-aligned single tile): pad by < 16 rows so the
        # single block matches the array. Never hit at real resolutions.
        a_bf16 = jnp.pad(a_bf16, ((0, tm - M), (0, 0)))
        m_out = tm

    out_bytes = int(jnp.dtype(out_dtype).itemsize)
    cost = pl.CostEstimate(
        flops=2 * m_out * K * COUT_PAD,
        transcendentals=(m_out * COUT_PAD) if act == "tanh" else 0,
        bytes_accessed=m_out * K * 2 + K * COUT_PAD * 2 + COUT_PAD * 4
                       + m_out * COUT_PAD * out_bytes,
    )

    if grid_m >= 3:
        # Pipeline is DMA-exposed (A-tile DMA >> MXU time); a third A buffer hides
        # DMA jitter at the cost of one extra bf16 tile of VMEM.
        a_spec = pl.BlockSpec((tm, K), lambda i: (i, 0), pipeline_mode=pl.Buffered(3))
    else:
        a_spec = pl.BlockSpec((tm, K), lambda i: (i, 0))

    out = pl.pallas_call(
        functools.partial(_gemm_bias_act_kernel, act=act),
        out_shape=jax.ShapeDtypeStruct((m_out, COUT_PAD), out_dtype),
        grid=(grid_m,),
        in_specs=[
            a_spec,                                           # A: streamed per tile
            pl.BlockSpec((K, COUT_PAD), lambda i: (0, 0)),    # W: constant -> resident
            pl.BlockSpec((1, COUT_PAD), lambda i: (0, 0)),    # bias: resident
        ],
        out_specs=pl.BlockSpec((tm, COUT_PAD), lambda i: (i, 0)),
        compiler_params=pltpu.CompilerParams(
            dimension_semantics=("parallel",),
            vmem_limit_bytes=32 * 1024 * 1024),
        cost_estimate=cost,
    )(a_bf16, w_bf16, b_f32.reshape(1, COUT_PAD))
    return out[:M] if m_out != M else out


# ------------------------------------------------------------------ conv / shuffle / warp glue
def conv2d(x_nhwc, w, b, stride, pad, act):
    """x: (N,H,W,Cin), w: (kH,kW,Cin,Cout), b: (Cout,). Same semantics as
    nn.Conv2d(Cin, Cout, k, stride, pad) (+ ReLU/Tanh) applied on NCHW tensors.
    ReLU layers return bf16 activations (consumed as bf16 by the next conv); the final
    Tanh flow layers return f32."""
    N, H, W_, Cin = x_nhwc.shape
    kH, kW, _, Cout = w.shape
    assert Cout <= COUT_PAD

    # Pad Cin to a multiple of 8 (fine-flow 14 -> 16): zero channels x zero-padded
    # weight rows leave the result unchanged but give 8-aligned K everywhere.
    cin_p = _round_up(Cin, 8)
    if cin_p != Cin:
        x_nhwc = jnp.pad(x_nhwc, ((0, 0), (0, 0), (0, 0), (0, cin_p - Cin)))
        w = jnp.pad(w, ((0, 0), (0, 0), (0, cin_p - Cin), (0, 0)))
        Cin = cin_p

    # bf16 operands before im2col so the materialized patches are half-width;
    # accumulation stays f32 inside the kernel. (No-op cast when the previous layer
    # already produced bf16 activations.)
    x_bf16 = x_nhwc.astype(jnp.bfloat16)
    xp = jnp.pad(x_bf16, ((0, 0), (pad, pad), (pad, pad), (0, 0)))
    Ho = (H + 2 * pad - kH) // stride + 1
    Wo = (W_ + 2 * pad - kW) // stride + 1

    # TODO(synk): fuse im2col into the Pallas kernel (manual halo DMA of a padded row
    # slab + in-VMEM patch assembly) to remove the kH*kW HBM inflation of `patches`;
    # halo-overlapped input windows are not expressible with a plain BlockSpec, so it
    # is kept in XLA here for robustness (especially the stride=2 layers).
    cols = []
    for i in range(kH):
        for j in range(kW):
            cols.append(xp[:, i:i + stride * Ho:stride, j:j + stride * Wo:stride, :])
    patches = jnp.concatenate(cols, axis=-1)              # (N, Ho, Wo, kH*kW*Cin) bf16
    K = kH * kW * Cin
    a = patches.reshape(N * Ho * Wo, K)

    # Zero-pad Cout to 128 -> lane-dense, unmasked output stores in the kernel.
    wm = jnp.pad(w.reshape(K, Cout).astype(jnp.bfloat16), ((0, 0), (0, COUT_PAD - Cout)))
    bp = jnp.pad(b.astype(jnp.float32), (0, COUT_PAD - Cout))

    out_dtype = jnp.float32 if act == "tanh" else jnp.bfloat16
    out = gemm_bias_act(a, wm, bp, act, out_dtype)        # (M, 128), Pallas kernel
    # Channel slice is bf16 for ReLU layers (half the old f32 cost) and fuses into the
    # consumer (next layer's im2col concat / the pixel-shuffle transpose).
    return out[:, :Cout].reshape(N, Ho, Wo, Cout)


def pixel_shuffle_nhwc(x, r):
    """Equivalent to torch.nn.PixelShuffle(r) applied on the NCHW counterpart."""
    N, H, W, Cr2 = x.shape
    C = Cr2 // (r * r)
    x = x.reshape(N, H, W, C, r, r)
    x = x.transpose(0, 1, 4, 2, 5, 3)
    return x.reshape(N, H * r, W * r, C)


def grid_sample_border(img_nchw, gx, gy):
    """F.grid_sample(img, grid, mode='bilinear', padding_mode='border',
    align_corners=False) with grid split into normalized gx/gy of shape (N,H,W)."""
    # TODO(synk): move the data-dependent 4-neighbour bilinear gather into a Pallas
    # kernel (scalar-prefetched row indices + per-row DMA gathers); here it stays in
    # XLA but as four independent gathers so each gather + weight multiply fuses and
    # the (N,C,4,H,W) intermediate is never materialized.
    N, C, H, W = img_nchw.shape
    ix = ((gx + 1.0) * W - 1.0) * 0.5
    iy = ((gy + 1.0) * H - 1.0) * 0.5
    ix = jnp.clip(ix, 0.0, W - 1.0)
    iy = jnp.clip(iy, 0.0, H - 1.0)
    x0 = jnp.floor(ix)
    y0 = jnp.floor(iy)
    wx1 = ix - x0
    wy1 = iy - y0
    wx0 = 1.0 - wx1
    wy0 = 1.0 - wy1
    x0i = x0.astype(jnp.int32)
    y0i = y0.astype(jnp.int32)
    x1i = jnp.minimum(x0i + 1, W - 1)
    y1i = jnp.minimum(y0i + 1, H - 1)

    flat = img_nchw.reshape(N, C, H * W)

    def gather(yi, xi):
        idx = (yi * W + xi).reshape(N, 1, H * W)
        v = jnp.take_along_axis(flat, jnp.broadcast_to(idx, (N, C, H * W)), axis=2)
        return v.reshape(N, C, H, W)

    v00 = gather(y0i, x0i)
    v01 = gather(y0i, x1i)
    v10 = gather(y1i, x0i)
    v11 = gather(y1i, x1i)
    w00 = (wy0 * wx0)[:, None]
    w01 = (wy0 * wx1)[:, None]
    w10 = (wy1 * wx0)[:, None]
    w11 = (wy1 * wx1)[:, None]
    return w00 * v00 + w01 * v01 + w10 * v10 + w11 * v11


def stn_warp(inputs_nchw, u, v):
    """VSRTorch STN(padding_mode='border'), normalized=False path.
    Note: the base mesh uses linspace(-1,1) spacing while grid_sample unnormalizes
    with the align_corners=False formula — this intentionally reproduces the VSRTorch
    reference (nd_meshgrid + F.grid_sample with default align_corners)."""
    N, C, H, W = inputs_nchw.shape
    mesh_x = jnp.linspace(-1.0, 1.0, W, dtype=jnp.float32)[None, None, :]
    mesh_y = jnp.linspace(-1.0, 1.0, H, dtype=jnp.float32)[None, :, None]
    gx = jnp.broadcast_to(mesh_x + u / W * 2.0, (N, H, W))
    gy = jnp.broadcast_to(mesh_y + v / H * 2.0, (N, H, W))
    return grid_sample_border(inputs_nchw, gx, gy)


# ------------------------------------------------------------------ parameters
def init_params(key, channel):
    specs = {
        "coarse": [(5, channel * 2, 24), (3, 24, 24), (5, 24, 24), (3, 24, 24), (3, 24, 32)],
        "fine": [(5, channel * 3 + 2, 24), (3, 24, 24), (3, 24, 24), (3, 24, 24), (3, 24, 8)],
    }
    params = {}
    for name, layers in specs.items():
        plist = []
        for (k, cin, cout) in layers:
            key, k1, k2 = jax.random.split(key, 3)
            fan_in = k * k * cin
            w = jax.random.normal(k1, (k, k, cin, cout), jnp.float32) / np.sqrt(fan_in)
            b = jax.random.normal(k2, (cout,), jnp.float32) * 0.01
            plist.append((w, b))
        params[name] = plist
    return params


# ------------------------------------------------------------------ full forward
def motion_compensation(params, target_nchw, ref_nchw, gain=32.0):
    nchw_to_nhwc = lambda x: jnp.transpose(x, (0, 2, 3, 1))
    nhwc_to_nchw = lambda x: jnp.transpose(x, (0, 3, 1, 2))

    target = nchw_to_nhwc(target_nchw)
    ref = nchw_to_nhwc(ref_nchw)

    def run_flow(x_nhwc, layers, strides):
        acts = ["relu", "relu", "relu", "relu", "tanh"]
        for (w, b), s, act in zip(layers, strides, acts):
            pad = (w.shape[0] - 1) // 2
            x_nhwc = conv2d(x_nhwc, w, b, s, pad, act)
        return x_nhwc

    # coarse flow
    x0 = jnp.concatenate([ref, target], axis=-1)
    f0 = run_flow(x0, params["coarse"], [2, 1, 2, 1, 1])
    f0 = pixel_shuffle_nhwc(f0, 4) * gain                 # (N, H, W, 2) f32
    flow0 = nhwc_to_nchw(f0)                              # (N, 2, H, W)
    w0 = stn_warp(ref_nchw, flow0[:, 0], flow0[:, 1])     # (N, C, H, W)

    # fine flow (14 input channels; conv2d pads Cin -> 16 internally)
    x1 = jnp.concatenate([ref, target, f0, nchw_to_nhwc(w0)], axis=-1)
    f1 = run_flow(x1, params["fine"], [2, 1, 1, 1, 1])
    f1 = pixel_shuffle_nhwc(f1, 2) * gain
    flow1 = nhwc_to_nchw(f1) + flow0
    w1 = stn_warp(ref_nchw, flow1[:, 0], flow1[:, 1])
    return w1, flow1


if __name__ == "__main__":
    key = jax.random.PRNGKey(0)
    kp, kt, kr = jax.random.split(key, 3)
    channel = 4
    N, H, W = 2, 16, 16

    params = init_params(kp, channel)
    target = jax.random.normal(kt, (N, channel, H, W), jnp.float32)
    ref = jax.random.normal(kr, (N, channel, H, W), jnp.float32)

    fwd = jax.jit(functools.partial(motion_compensation, gain=32.0))
    w1, flow1 = fwd(params, target, ref)
    jax.block_until_ready((w1, flow1))

    assert w1.shape == (N, channel, H, W)
    assert flow1.shape == (N, 2, H, W)
    assert jnp.all(jnp.isfinite(w1)) and jnp.all(jnp.isfinite(flow1))
    print("KERNEL_OK")
</pallas_src>

<mosaic_0001>
module attributes {stable_mosaic.version = 11 : i64} {
  func.func private @main(%arg0: i32) attributes {dimension_semantics = [#tpu.dimension_semantics<core_parallel>], iteration_bounds = array<i64: 2>, tpu.core_type = #tpu.core_type<sc_scalar_subcore>, window_params = []} {
    return
  }
}

module attributes {stable_mosaic.version = 11 : i64} {
  func.func private @main(%arg0: i32) attributes {dimension_semantics = [#tpu.dimension_semantics<core_parallel>], iteration_bounds = array<i64: 2>, tpu.core_type = #tpu.core_type<sc_scalar_subcore>, window_params = []} {
    return
  }
}

module attributes {stable_mosaic.version = 11 : i64} {
  func.func @_gemm_bias_act_kernel(%arg0: i32, %arg1: memref<128x200xbf16, #tpu.memory_space<vmem>>, %arg2: memref<200x128xbf16, #tpu.memory_space<vmem>>, %arg3: memref<1x128xf32, #tpu.memory_space<vmem>>, %arg4: memref<128x128xbf16, #tpu.memory_space<vmem>>) attributes {dimension_semantics = [#tpu.dimension_semantics<parallel>], iteration_bounds = array<i64: 1>, scalar_prefetch = 0 : i64, scratch_operands = 0 : i64, tpu.core_type = #tpu.core_type<tc>, window_params = [{transform_indices = @transform_0, window_bounds = array<i64: 128, 200>}, {pipeline_mode = #tpu.pipeline_mode<synchronous>, transform_indices = @transform_1, window_bounds = array<i64: 200, 128>}, {pipeline_mode = #tpu.pipeline_mode<synchronous>, transform_indices = @transform_2, window_bounds = array<i64: 1, 128>}, {transform_indices = @transform_3, window_bounds = array<i64: 128, 128>}]} {
    %c0 = arith.constant 0 : index
    %c0_0 = arith.constant 0 : index
    %0 = vector.load %arg1[%c0, %c0_0] : memref<128x200xbf16, #tpu.memory_space<vmem>>, vector<128x200xbf16>
    %c0_1 = arith.constant 0 : index
    %c0_2 = arith.constant 0 : index
    %1 = vector.load %arg2[%c0_1, %c0_2] : memref<200x128xbf16, #tpu.memory_space<vmem>>, vector<200x128xbf16>
    %cst = arith.constant dense<0.000000e+00> : vector<128x128xf32>
    %2 = tpu.matmul %0, %1, %cst {dimension_numbers = #tpu.dot_dimension_numbers<[1], [0], [0], [1], [0, 0, 1, 1], [], []>} : vector<128x200xbf16>, vector<200x128xbf16>, vector<128x128xf32> -> vector<128x128xf32>
    %c0_3 = arith.constant 0 : index
    %c0_4 = arith.constant 0 : index
    %3 = vector.load %arg3[%c0_3, %c0_4] : memref<1x128xf32, #tpu.memory_space<vmem>>, vector<1x128xf32>
    %4 = vector.broadcast %3 : vector<1x128xf32> to vector<128x128xf32>
    %5 = arith.addf %2, %4 : vector<128x128xf32>
    %cst_5 = arith.constant 0.000000e+00 : f32
    %6 = vector.broadcast %cst_5 : f32 to vector<128x128xf32>
    %7 = arith.maximumf %5, %6 : vector<128x128xf32>
    %8 = arith.truncf %7 : vector<128x128xf32> to vector<128x128xbf16>
    %c0_6 = arith.constant 0 : index
    %c0_7 = arith.constant 0 : index
    %9 = vector.load %arg4[%c0_6, %c0_7] : memref<128x128xbf16, #tpu.memory_space<vmem>>, vector<128x128xbf16>
    tpu.vector_store %arg4[%c0_6, %c0_7], %8 {strides = array<i32>} : memref<128x128xbf16, #tpu.memory_space<vmem>>, vector<128x128xbf16>,
    return
  }
  func.func @transform_0(%arg0: i32) -> (i32, i32) {
    %c0_i32 = arith.constant 0 : i32
    %c0_i32_0 = arith.constant 0 : i32
    return %arg0, %c0_i32 : i32, i32
  }
  func.func @transform_1(%arg0: i32) -> (i32, i32) {
    %c0_i32 = arith.constant 0 : i32
    %c0_i32_0 = arith.constant 0 : i32
    %c0_i32_1 = arith.constant 0 : i32
    return %c0_i32, %c0_i32_0 : i32, i32
  }
  func.func @transform_2(%arg0: i32) -> (i32, i32) {
    %c0_i32 = arith.constant 0 : i32
    %c0_i32_0 = arith.constant 0 : i32
    %c0_i32_1 = arith.constant 0 : i32
    return %c0_i32, %c0_i32_0 : i32, i32
  }
  func.func @transform_3(%arg0: i32) -> (i32, i32) {
    %c0_i32 = arith.constant 0 : i32
    %c0_i32_0 = arith.constant 0 : i32
    return %arg0, %c0_i32 : i32, i32
  }
}

module attributes {stable_mosaic.version = 11 : i64} {
  func.func @_gemm_bias_act_kernel(%arg0: i32, %arg1: memref<128x216xbf16, #tpu.memory_space<vmem>>, %arg2: memref<216x128xbf16, #tpu.memory_space<vmem>>, %arg3: memref<1x128xf32, #tpu.memory_space<vmem>>, %arg4: memref<128x128xbf16, #tpu.memory_space<vmem>>) attributes {dimension_semantics = [#tpu.dimension_semantics<parallel>], iteration_bounds = array<i64: 1>, scalar_prefetch = 0 : i64, scratch_operands = 0 : i64, tpu.core_type = #tpu.core_type<tc>, window_params = [{transform_indices = @transform_0, window_bounds = array<i64: 128, 216>}, {pipeline_mode = #tpu.pipeline_mode<synchronous>, transform_indices = @transform_1, window_bounds = array<i64: 216, 128>}, {pipeline_mode = #tpu.pipeline_mode<synchronous>, transform_indices = @transform_2, window_bounds = array<i64: 1, 128>}, {transform_indices = @transform_3, window_bounds = array<i64: 128, 128>}]} {
    %c0 = arith.constant 0 : index
    %c0_0 = arith.constant 0 : index
    %0 = vector.load %arg1[%c0, %c0_0] : memref<128x216xbf16, #tpu.memory_space<vmem>>, vector<128x216xbf16>
    %c0_1 = arith.constant 0 : index
    %c0_2 = arith.constant 0 : index
    %1 = vector.load %arg2[%c0_1, %c0_2] : memref<216x128xbf16, #tpu.memory_space<vmem>>, vector<216x128xbf16>
    %cst = arith.constant dense<0.000000e+00> : vector<128x128xf32>
    %2 = tpu.matmul %0, %1, %cst {dimension_numbers = #tpu.dot_dimension_numbers<[1], [0], [0], [1], [0, 0, 1, 1], [], []>} : vector<128x216xbf16>, vector<216x128xbf16>, vector<128x128xf32> -> vector<128x128xf32>
    %c0_3 = arith.constant 0 : index
    %c0_4 = arith.constant 0 : index
    %3 = vector.load %arg3[%c0_3, %c0_4] : memref<1x128xf32, #tpu.memory_space<vmem>>, vector<1x128xf32>
    %4 = vector.broadcast %3 : vector<1x128xf32> to vector<128x128xf32>
    %5 = arith.addf %2, %4 : vector<128x128xf32>
    %cst_5 = arith.constant 0.000000e+00 : f32
    %6 = vector.broadcast %cst_5 : f32 to vector<128x128xf32>
    %7 = arith.maximumf %5, %6 : vector<128x128xf32>
    %8 = arith.truncf %7 : vector<128x128xf32> to vector<128x128xbf16>
    %c0_6 = arith.constant 0 : index
    %c0_7 = arith.constant 0 : index
    %9 = vector.load %arg4[%c0_6, %c0_7] : memref<128x128xbf16, #tpu.memory_space<vmem>>, vector<128x128xbf16>
    tpu.vector_store %arg4[%c0_6, %c0_7], %8 {strides = array<i32>} : memref<128x128xbf16, #tpu.memory_space<vmem>>, vector<128x128xbf16>,
    return
  }
  func.func @transform_0(%arg0: i32) -> (i32, i32) {
    %c0_i32 = arith.constant 0 : i32
    %c0_i32_0 = arith.constant 0 : i32
    return %arg0, %c0_i32 : i32, i32
  }
  func.func @transform_1(%arg0: i32) -> (i32, i32) {
    %c0_i32 = arith.constant 0 : i32
    %c0_i32_0 = arith.constant 0 : i32
    %c0_i32_1 = arith.constant 0 : i32
    return %c0_i32, %c0_i32_0 : i32, i32
  }
  func.func @transform_2(%arg0: i32) -> (i32, i32) {
    %c0_i32 = arith.constant 0 : i32
    %c0_i32_0 = arith.constant 0 : i32
    %c0_i32_1 = arith.constant 0 : i32
    return %c0_i32, %c0_i32_0 : i32, i32
  }
  func.func @transform_3(%arg0: i32) -> (i32, i32) {
    %c0_i32 = arith.constant 0 : i32
    %c0_i32_0 = arith.constant 0 : i32
    return %arg0, %c0_i32 : i32, i32
  }
}

module attributes {stable_mosaic.version = 11 : i64} {
  func.func @_gemm_bias_act_kernel(%arg0: i32, %arg1: memref<32x600xbf16, #tpu.memory_space<vmem>>, %arg2: memref<600x128xbf16, #tpu.memory_space<vmem>>, %arg3: memref<1x128xf32, #tpu.memory_space<vmem>>, %arg4: memref<32x128xbf16, #tpu.memory_space<vmem>>) attributes {dimension_semantics = [#tpu.dimension_semantics<parallel>], iteration_bounds = array<i64: 1>, scalar_prefetch = 0 : i64, scratch_operands = 0 : i64, tpu.core_type = #tpu.core_type<tc>, window_params = [{transform_indices = @transform_0, window_bounds = array<i64: 32, 600>}, {pipeline_mode = #tpu.pipeline_mode<synchronous>, transform_indices = @transform_1, window_bounds = array<i64: 600, 128>}, {pipeline_mode = #tpu.pipeline_mode<synchronous>, transform_indices = @transform_2, window_bounds = array<i64: 1, 128>}, {transform_indices = @transform_3, window_bounds = array<i64: 32, 128>}]} {
    %c0 = arith.constant 0 : index
    %c0_0 = arith.constant 0 : index
    %0 = vector.load %arg1[%c0, %c0_0] : memref<32x600xbf16, #tpu.memory_space<vmem>>, vector<32x600xbf16>
    %c0_1 = arith.constant 0 : index
    %c0_2 = arith.constant 0 : index
    %1 = vector.load %arg2[%c0_1, %c0_2] : memref<600x128xbf16, #tpu.memory_space<vmem>>, vector<600x128xbf16>
    %cst = arith.constant dense<0.000000e+00> : vector<32x128xf32>
    %2 = tpu.matmul %0, %1, %cst {dimension_numbers = #tpu.dot_dimension_numbers<[1], [0], [0], [1], [0, 0, 1, 1], [], []>} : vector<32x600xbf16>, vector<600x128xbf16>, vector<32x128xf32> -> vector<32x128xf32>
    %c0_3 = arith.constant 0 : index
    %c0_4 = arith.constant 0 : index
    %3 = vector.load %arg3[%c0_3, %c0_4] : memref<1x128xf32, #tpu.memory_space<vmem>>, vector<1x128xf32>
    %4 = vector.broadcast %3 : vector<1x128xf32> to vector<32x128xf32>
    %5 = arith.addf %2, %4 : vector<32x128xf32>
    %cst_5 = arith.constant 0.000000e+00 : f32
    %6 = vector.broadcast %cst_5 : f32 to vector<32x128xf32>
    %7 = arith.maximumf %5, %6 : vector<32x128xf32>
    %8 = arith.truncf %7 : vector<32x128xf32> to vector<32x128xbf16>
    %c0_6 = arith.constant 0 : index
    %c0_7 = arith.constant 0 : index
    %9 = vector.load %arg4[%c0_6, %c0_7] : memref<32x128xbf16, #tpu.memory_space<vmem>>, vector<32x128xbf16>
    tpu.vector_store %arg4[%c0_6, %c0_7], %8 {strides = array<i32>} : memref<32x128xbf16, #tpu.memory_space<vmem>>, vector<32x128xbf16>,
    return
  }
  func.func @transform_0(%arg0: i32) -> (i32, i32) {
    %c0_i32 = arith.constant 0 : i32
    %c0_i32_0 = arith.constant 0 : i32
    return %arg0, %c0_i32 : i32, i32
  }
  func.func @transform_1(%arg0: i32) -> (i32, i32) {
    %c0_i32 = arith.constant 0 : i32
    %c0_i32_0 = arith.constant 0 : i32
    %c0_i32_1 = arith.constant 0 : i32
    return %c0_i32, %c0_i32_0 : i32, i32
  }
  func.func @transform_2(%arg0: i32) -> (i32, i32) {
    %c0_i32 = arith.constant 0 : i32
    %c0_i32_0 = arith.constant 0 : i32
    %c0_i32_1 = arith.constant 0 : i32
    return %c0_i32, %c0_i32_0 : i32, i32
  }
  func.func @transform_3(%arg0: i32) -> (i32, i32) {
    %c0_i32 = arith.constant 0 : i32
    %c0_i32_0 = arith.constant 0 : i32
    return %arg0, %c0_i32 : i32, i32
  }
}

module attributes {stable_mosaic.version = 11 : i64} {
  func.func @_gemm_bias_act_kernel(%arg0: i32, %arg1: memref<32x216xbf16, #tpu.memory_space<vmem>>, %arg2: memref<216x128xbf16, #tpu.memory_space<vmem>>, %arg3: memref<1x128xf32, #tpu.memory_space<vmem>>, %arg4: memref<32x128xbf16, #tpu.memory_space<vmem>>) attributes {dimension_semantics = [#tpu.dimension_semantics<parallel>], iteration_bounds = array<i64: 1>, scalar_prefetch = 0 : i64, scratch_operands = 0 : i64, tpu.core_type = #tpu.core_type<tc>, window_params = [{transform_indices = @transform_0, window_bounds = array<i64: 32, 216>}, {pipeline_mode = #tpu.pipeline_mode<synchronous>, transform_indices = @transform_1, window_bounds = array<i64: 216, 128>}, {pipeline_mode = #tpu.pipeline_mode<synchronous>, transform_indices = @transform_2, window_bounds = array<i64: 1, 128>}, {transform_indices = @transform_3, window_bounds = array<i64: 32, 128>}]} {
    %c0 = arith.constant 0 : index
    %c0_0 = arith.constant 0 : index
    %0 = vector.load %arg1[%c0, %c0_0] : memref<32x216xbf16, #tpu.memory_space<vmem>>, vector<32x216xbf16>
    %c0_1 = arith.constant 0 : index
    %c0_2 = arith.constant 0 : index
    %1 = vector.load %arg2[%c0_1, %c0_2] : memref<216x128xbf16, #tpu.memory_space<vmem>>, vector<216x128xbf16>
    %cst = arith.constant dense<0.000000e+00> : vector<32x128xf32>
    %2 = tpu.matmul %0, %1, %cst {dimension_numbers = #tpu.dot_dimension_numbers<[1], [0], [0], [1], [0, 0, 1, 1], [], []>} : vector<32x216xbf16>, vector<216x128xbf16>, vector<32x128xf32> -> vector<32x128xf32>
    %c0_3 = arith.constant 0 : index
    %c0_4 = arith.constant 0 : index
    %3 = vector.load %arg3[%c0_3, %c0_4] : memref<1x128xf32, #tpu.memory_space<vmem>>, vector<1x128xf32>
    %4 = vector.broadcast %3 : vector<1x128xf32> to vector<32x128xf32>
    %5 = arith.addf %2, %4 : vector<32x128xf32>
    %cst_5 = arith.constant 0.000000e+00 : f32
    %6 = vector.broadcast %cst_5 : f32 to vector<32x128xf32>
    %7 = arith.maximumf %5, %6 : vector<32x128xf32>
    %8 = arith.truncf %7 : vector<32x128xf32> to vector<32x128xbf16>
    %c0_6 = arith.constant 0 : index
    %c0_7 = arith.constant 0 : index
    %9 = vector.load %arg4[%c0_6, %c0_7] : memref<32x128xbf16, #tpu.memory_space<vmem>>, vector<32x128xbf16>
    tpu.vector_store %arg4[%c0_6, %c0_7], %8 {strides = array<i32>} : memref<32x128xbf16, #tpu.memory_space<vmem>>, vector<32x128xbf16>,
    return
  }
  func.func @transform_0(%arg0: i32) -> (i32, i32) {
    %c0_i32 = arith.constant 0 : i32
    %c0_i32_0 = arith.constant 0 : i32
    return %arg0, %c0_i32 : i32, i32
  }
  func.func @transform_1(%arg0: i32) -> (i32, i32) {
    %c0_i32 = arith.constant 0 : i32
    %c0_i32_0 = arith.constant 0 : i32
    %c0_i32_1 = arith.constant 0 : i32
    return %c0_i32, %c0_i32_0 : i32, i32
  }
  func.func @transform_2(%arg0: i32) -> (i32, i32) {
    %c0_i32 = arith.constant 0 : i32
    %c0_i32_0 = arith.constant 0 : i32
    %c0_i32_1 = arith.constant 0 : i32
    return %c0_i32, %c0_i32_0 : i32, i32
  }
  func.func @transform_3(%arg0: i32) -> (i32, i32) {
    %c0_i32 = arith.constant 0 : i32
    %c0_i32_0 = arith.constant 0 : i32
    return %arg0, %c0_i32 : i32, i32
  }
}

module attributes {stable_mosaic.version = 11 : i64} {
  func.func @_gemm_bias_act_kernel(%arg0: i32, %arg1: memref<32x216xbf16, #tpu.memory_space<vmem>>, %arg2: memref<216x128xbf16, #tpu.memory_space<vmem>>, %arg3: memref<1x128xf32, #tpu.memory_space<vmem>>, %arg4: memref<32x128xf32, #tpu.memory_space<vmem>>) attributes {dimension_semantics = [#tpu.dimension_semantics<parallel>], iteration_bounds = array<i64: 1>, scalar_prefetch = 0 : i64, scratch_operands = 0 : i64, tpu.core_type = #tpu.core_type<tc>, window_params = [{transform_indices = @transform_0, window_bounds = array<i64: 32, 216>}, {pipeline_mode = #tpu.pipeline_mode<synchronous>, transform_indices = @transform_1, window_bounds = array<i64: 216, 128>}, {pipeline_mode = #tpu.pipeline_mode<synchronous>, transform_indices = @transform_2, window_bounds = array<i64: 1, 128>}, {transform_indices = @transform_3, window_bounds = array<i64: 32, 128>}]} {
    %c0 = arith.constant 0 : index
    %c0_0 = arith.constant 0 : index
    %0 = vector.load %arg1[%c0, %c0_0] : memref<32x216xbf16, #tpu.memory_space<vmem>>, vector<32x216xbf16>
    %c0_1 = arith.constant 0 : index
    %c0_2 = arith.constant 0 : index
    %1 = vector.load %arg2[%c0_1, %c0_2] : memref<216x128xbf16, #tpu.memory_space<vmem>>, vector<216x128xbf16>
    %cst = arith.constant dense<0.000000e+00> : vector<32x128xf32>
    %2 = tpu.matmul %0, %1, %cst {dimension_numbers = #tpu.dot_dimension_numbers<[1], [0], [0], [1], [0, 0, 1, 1], [], []>} : vector<32x216xbf16>, vector<216x128xbf16>, vector<32x128xf32> -> vector<32x128xf32>
    %c0_3 = arith.constant 0 : index
    %c0_4 = arith.constant 0 : index
    %3 = vector.load %arg3[%c0_3, %c0_4] : memref<1x128xf32, #tpu.memory_space<vmem>>, vector<1x128xf32>
    %4 = vector.broadcast %3 : vector<1x128xf32> to vector<32x128xf32>
    %5 = arith.addf %2, %4 : vector<32x128xf32>
    %6 = math.tanh %5 : vector<32x128xf32>
    %c0_5 = arith.constant 0 : index
    %c0_6 = arith.constant 0 : index
    %7 = vector.load %arg4[%c0_5, %c0_6] : memref<32x128xf32, #tpu.memory_space<vmem>>, vector<32x128xf32>
    tpu.vector_store %arg4[%c0_5, %c0_6], %6 {strides = array<i32>} : memref<32x128xf32, #tpu.memory_space<vmem>>, vector<32x128xf32>,
    return
  }
  func.func @transform_0(%arg0: i32) -> (i32, i32) {
    %c0_i32 = arith.constant 0 : i32
    %c0_i32_0 = arith.constant 0 : i32
    return %arg0, %c0_i32 : i32, i32
  }
  func.func @transform_1(%arg0: i32) -> (i32, i32) {
    %c0_i32 = arith.constant 0 : i32
    %c0_i32_0 = arith.constant 0 : i32
    %c0_i32_1 = arith.constant 0 : i32
    return %c0_i32, %c0_i32_0 : i32, i32
  }
  func.func @transform_2(%arg0: i32) -> (i32, i32) {
    %c0_i32 = arith.constant 0 : i32
    %c0_i32_0 = arith.constant 0 : i32
    %c0_i32_1 = arith.constant 0 : i32
    return %c0_i32, %c0_i32_0 : i32, i32
  }
  func.func @transform_3(%arg0: i32) -> (i32, i32) {
    %c0_i32 = arith.constant 0 : i32
    %c0_i32_0 = arith.constant 0 : i32
    return %arg0, %c0_i32 : i32, i32
  }
}

module attributes {stable_mosaic.version = 11 : i64} {
  func.func @_gemm_bias_act_kernel(%arg0: i32, %arg1: memref<128x400xbf16, #tpu.memory_space<vmem>>, %arg2: memref<400x128xbf16, #tpu.memory_space<vmem>>, %arg3: memref<1x128xf32, #tpu.memory_space<vmem>>, %arg4: memref<128x128xbf16, #tpu.memory_space<vmem>>) attributes {dimension_semantics = [#tpu.dimension_semantics<parallel>], iteration_bounds = array<i64: 1>, scalar_prefetch = 0 : i64, scratch_operands = 0 : i64, tpu.core_type = #tpu.core_type<tc>, window_params = [{transform_indices = @transform_0, window_bounds = array<i64: 128, 400>}, {pipeline_mode = #tpu.pipeline_mode<synchronous>, transform_indices = @transform_1, window_bounds = array<i64: 400, 128>}, {pipeline_mode = #tpu.pipeline_mode<synchronous>, transform_indices = @transform_2, window_bounds = array<i64: 1, 128>}, {transform_indices = @transform_3, window_bounds = array<i64: 128, 128>}]} {
    %c0 = arith.constant 0 : index
    %c0_0 = arith.constant 0 : index
    %0 = vector.load %arg1[%c0, %c0_0] : memref<128x400xbf16, #tpu.memory_space<vmem>>, vector<128x400xbf16>
    %c0_1 = arith.constant 0 : index
    %c0_2 = arith.constant 0 : index
    %1 = vector.load %arg2[%c0_1, %c0_2] : memref<400x128xbf16, #tpu.memory_space<vmem>>, vector<400x128xbf16>
    %cst = arith.constant dense<0.000000e+00> : vector<128x128xf32>
    %2 = tpu.matmul %0, %1, %cst {dimension_numbers = #tpu.dot_dimension_numbers<[1], [0], [0], [1], [0, 0, 1, 1], [], []>} : vector<128x400xbf16>, vector<400x128xbf16>, vector<128x128xf32> -> vector<128x128xf32>
    %c0_3 = arith.constant 0 : index
    %c0_4 = arith.constant 0 : index
    %3 = vector.load %arg3[%c0_3, %c0_4] : memref<1x128xf32, #tpu.memory_space<vmem>>, vector<1x128xf32>
    %4 = vector.broadcast %3 : vector<1x128xf32> to vector<128x128xf32>
    %5 = arith.addf %2, %4 : vector<128x128xf32>
    %cst_5 = arith.constant 0.000000e+00 : f32
    %6 = vector.broadcast %cst_5 : f32 to vector<128x128xf32>
    %7 = arith.maximumf %5, %6 : vector<128x128xf32>
    %8 = arith.truncf %7 : vector<128x128xf32> to vector<128x128xbf16>
    %c0_6 = arith.constant 0 : index
    %c0_7 = arith.constant 0 : index
    %9 = vector.load %arg4[%c0_6, %c0_7] : memref<128x128xbf16, #tpu.memory_space<vmem>>, vector<128x128xbf16>
    tpu.vector_store %arg4[%c0_6, %c0_7], %8 {strides = array<i32>} : memref<128x128xbf16, #tpu.memory_space<vmem>>, vector<128x128xbf16>,
    return
  }
  func.func @transform_0(%arg0: i32) -> (i32, i32) {
    %c0_i32 = arith.constant 0 : i32
    %c0_i32_0 = arith.constant 0 : i32
    return %arg0, %c0_i32 : i32, i32
  }
  func.func @transform_1(%arg0: i32) -> (i32, i32) {
    %c0_i32 = arith.constant 0 : i32
    %c0_i32_0 = arith.constant 0 : i32
    %c0_i32_1 = arith.constant 0 : i32
    return %c0_i32, %c0_i32_0 : i32, i32
  }
  func.func @transform_2(%arg0: i32) -> (i32, i32) {
    %c0_i32 = arith.constant 0 : i32
    %c0_i32_0 = arith.constant 0 : i32
    %c0_i32_1 = arith.constant 0 : i32
    return %c0_i32, %c0_i32_0 : i32, i32
  }
  func.func @transform_3(%arg0: i32) -> (i32, i32) {
    %c0_i32 = arith.constant 0 : i32
    %c0_i32_0 = arith.constant 0 : i32
    return %arg0, %c0_i32 : i32, i32
  }
}

module attributes {stable_mosaic.version = 11 : i64} {
  func.func @_gemm_bias_act_kernel(%arg0: i32, %arg1: memref<128x216xbf16, #tpu.memory_space<vmem>>, %arg2: memref<216x128xbf16, #tpu.memory_space<vmem>>, %arg3: memref<1x128xf32, #tpu.memory_space<vmem>>, %arg4: memref<128x128xf32, #tpu.memory_space<vmem>>) attributes {dimension_semantics = [#tpu.dimension_semantics<parallel>], iteration_bounds = array<i64: 1>, scalar_prefetch = 0 : i64, scratch_operands = 0 : i64, tpu.core_type = #tpu.core_type<tc>, window_params = [{transform_indices = @transform_0, window_bounds = array<i64: 128, 216>}, {pipeline_mode = #tpu.pipeline_mode<synchronous>, transform_indices = @transform_1, window_bounds = array<i64: 216, 128>}, {pipeline_mode = #tpu.pipeline_mode<synchronous>, transform_indices = @transform_2, window_bounds = array<i64: 1, 128>}, {transform_indices = @transform_3, window_bounds = array<i64: 128, 128>}]} {
    %c0 = arith.constant 0 : index
    %c0_0 = arith.constant 0 : index
    %0 = vector.load %arg1[%c0, %c0_0] : memref<128x216xbf16, #tpu.memory_space<vmem>>, vector<128x216xbf16>
    %c0_1 = arith.constant 0 : index
    %c0_2 = arith.constant 0 : index
    %1 = vector.load %arg2[%c0_1, %c0_2] : memref<216x128xbf16, #tpu.memory_space<vmem>>, vector<216x128xbf16>
    %cst = arith.constant dense<0.000000e+00> : vector<128x128xf32>
    %2 = tpu.matmul %0, %1, %cst {dimension_numbers = #tpu.dot_dimension_numbers<[1], [0], [0], [1], [0, 0, 1, 1], [], []>} : vector<128x216xbf16>, vector<216x128xbf16>, vector<128x128xf32> -> vector<128x128xf32>
    %c0_3 = arith.constant 0 : index
    %c0_4 = arith.constant 0 : index
    %3 = vector.load %arg3[%c0_3, %c0_4] : memref<1x128xf32, #tpu.memory_space<vmem>>, vector<1x128xf32>
    %4 = vector.broadcast %3 : vector<1x128xf32> to vector<128x128xf32>
    %5 = arith.addf %2, %4 : vector<128x128xf32>
    %6 = math.tanh %5 : vector<128x128xf32>
    %c0_5 = arith.constant 0 : index
    %c0_6 = arith.constant 0 : index
    %7 = vector.load %arg4[%c0_5, %c0_6] : memref<128x128xf32, #tpu.memory_space<vmem>>, vector<128x128xf32>
    tpu.vector_store %arg4[%c0_5, %c0_6], %6 {strides = array<i32>} : memref<128x128xf32, #tpu.memory_space<vmem>>, vector<128x128xf32>,
    return
  }
  func.func @transform_0(%arg0: i32) -> (i32, i32) {
    %c0_i32 = arith.constant 0 : i32
    %c0_i32_0 = arith.constant 0 : i32
    return %arg0, %c0_i32 : i32, i32
  }
  func.func @transform_1(%arg0: i32) -> (i32, i32) {
    %c0_i32 = arith.constant 0 : i32
    %c0_i32_0 = arith.constant 0 : i32
    %c0_i32_1 = arith.constant 0 : i32
    return %c0_i32, %c0_i32_0 : i32, i32
  }
  func.func @transform_2(%arg0: i32) -> (i32, i32) {
    %c0_i32 = arith.constant 0 : i32
    %c0_i32_0 = arith.constant 0 : i32
    %c0_i32_1 = arith.constant 0 : i32
    return %c0_i32, %c0_i32_0 : i32, i32
  }
  func.func @transform_3(%arg0: i32) -> (i32, i32) {
    %c0_i32 = arith.constant 0 : i32
    %c0_i32_0 = arith.constant 0 : i32
    return %arg0, %c0_i32 : i32, i32
  }
}

</mosaic_0001>

<llo_original>
// kernel: motion_compensation.10
$region0: #{motion_compensation.10}
  #allocation0 [shape = 'u32[]', space=smem, size = 0x4, offset = 0x4, fixed_abs, tag = 'smem constant byte address 0x4 - core index']
  #allocation1 [shape = 'u32[144,128]{1,0:T(1,128)}', space=vmem, size = 0x12000, scoped, tag = 'internal scratch']
  %s0 = inlined_call_operand.vmem [shape: bf16[128,200], index: 0, kind: input, shape index: {}]
  %s1 = inlined_call_operand.vmem [shape: bf16[200,128], index: 1, kind: input, shape index: {}]
  %s2 = inlined_call_operand.vmem [shape: f32[1,128], index: 2, kind: input, shape index: {}]
  %s3 = inlined_call_operand.vmem [shape: bf16[128,128], index: 3, kind: output, shape index: {}]
  %s4 = sld [smem:[#allocation0]]
  $region22: #{motion_compensation.10} parent=0
    _
  %s6 = ssub.s32 1, %s4
  %s7 = scalar_select 0, %s6, %s4
  // Predicated region
  $region2: #{motion_compensation.10} parent=0 // pred_check
    _
  $region3: #{motion_compensation.10} parent=0 // pred_check_branch
    %9 = sbr.rel (0) target = $region5
  $region4: #{motion_compensation.10} parent=0 // pred_region
    _
  $region5: #{motion_compensation.10} parent=0 // pred_fallthru
    _
  // Predicated region
  $region6: #{motion_compensation.10} parent=0 // pred_check
    _
  $region7: #{motion_compensation.10} parent=0 // pred_check_branch
    %11 = sbr.rel (0) target = $region9
  $region8: #{motion_compensation.10} parent=0 // pred_region
    _
  $region9: #{motion_compensation.10} parent=0 // pred_fallthru
    _
  // Predicated region
  $region10: #{motion_compensation.10} parent=0 // pred_check
    _
  $region11: #{motion_compensation.10} parent=0 // pred_check_branch
    %13 = sbr.rel (0) target = $region13
  $region12: #{motion_compensation.10} parent=0 // pred_region
    _
  $region13: #{motion_compensation.10} parent=0 // pred_fallthru
    _
  %v15 = vld [vmem:[%s0] sm:$0xff]
  %v16 = vld [vmem:[%s0 + $0x8] sm:$0xff]
  %v17 = vld [vmem:[%s0 + $0x10] sm:$0xff]
  %v18 = vld [vmem:[%s0 + $0x18] sm:$0xff]
  %v19 = vld [vmem:[%s0 + $0x20] sm:$0xff]
  %v20 = vld [vmem:[%s0 + $0x28] sm:$0xff]
  %v21 = vld [vmem:[%s0 + $0x30] sm:$0xff]
  %v22 = vld [vmem:[%s0 + $0x38] sm:$0xff]
  %v23 = vld [vmem:[%s0 + $0x40] sm:$0xff]
  %v24 = vld [vmem:[%s0 + $0x48] sm:$0xff]
  %v25 = vld [vmem:[%s0 + $0x50] sm:$0xff]
  %v26 = vld [vmem:[%s0 + $0x58] sm:$0xff]
  %v27 = vld [vmem:[%s0 + $0x60] sm:$0xff]
  %v28 = vld [vmem:[%s0 + $0x68] sm:$0xff]
  %v29 = vld [vmem:[%s0 + $0x70] sm:$0xff]
  %v30 = vld [vmem:[%s0 + $0x78] sm:$0xff]
  %v31 = vld [vmem:[%s1] sm:$0xf]
  %v32 = vld [vmem:[%s1 + $0x4] sm:$0xf]
  %v33 = vld [vmem:[%s1 + $0x8] sm:$0xf]
  %v34 = vld [vmem:[%s1 + $0xc] sm:$0xf]
  %v35 = vld [vmem:[%s1 + $0x10] sm:$0xf]
  %v36 = vld [vmem:[%s1 + $0x14] sm:$0xf]
  %v37 = vld [vmem:[%s1 + $0x18] sm:$0xf]
  %v38 = vld [vmem:[%s1 + $0x1c] sm:$0xf]
  %v39 = vld [vmem:[%s1 + $0x20] sm:$0xf]
  %v40 = vld [vmem:[%s1 + $0x24] sm:$0xf]
  %v41 = vld [vmem:[%s1 + $0x28] sm:$0xf]
  %v42 = vld [vmem:[%s1 + $0x2c] sm:$0xf]
  %v43 = vld [vmem:[%s1 + $0x30] sm:$0xf]
  %v44 = vld [vmem:[%s1 + $0x34] sm:$0xf]
  %v45 = vld [vmem:[%s1 + $0x38] sm:$0xf]
  %v46 = vld [vmem:[%s1 + $0x3c] sm:$0xf]
  %v47 = vld [vmem:[%s1 + $0x40] sm:$0xf]
  %v48 = vld [vmem:[%s1 + $0x44] sm:$0xf]
  %v49 = vld [vmem:[%s1 + $0x48] sm:$0xf]
  %v50 = vld [vmem:[%s1 + $0x4c] sm:$0xf]
  %v51 = vld [vmem:[%s1 + $0x50] sm:$0xf]
  %v52 = vld [vmem:[%s1 + $0x54] sm:$0xf]
  %v53 = vld [vmem:[%s1 + $0x58] sm:$0xf]
  %v54 = vld [vmem:[%s1 + $0x5c] sm:$0xf]
  %v55 = vld [vmem:[%s1 + $0x60] sm:$0xf]
  %v56 = vld [vmem:[%s2] sm:$0x1]
  %v58 = vlaneseq
  %v59 = vshrl.u32 %v58, 7
  %v60 = vsub.s32 0, %v59
  %v61 = vrot.slane %v56, %v60
  %v79 = vunpack.c.l.b16 %v15
  %v80 = vunpack.c.h.b16 %v15
  %v81 = vunpack.c.l.b16 %v16
  %v82 = vunpack.c.h.b16 %v16
  %v83 = vunpack.c.l.b16 %v17
  %v84 = vunpack.c.h.b16 %v17
  %v85 = vunpack.c.l.b16 %v18
  %v86 = vunpack.c.h.b16 %v18
  %v87 = vunpack.c.l.b16 %v19
  %v88 = vunpack.c.h.b16 %v19
  %v89 = vunpack.c.l.b16 %v20
  %v90 = vunpack.c.h.b16 %v20
  %v91 = vunpack.c.l.b16 %v21
  %v92 = vunpack.c.h.b16 %v21
  %v93 = vunpack.c.l.b16 %v22
  %v94 = vunpack.c.h.b16 %v22
  %v95 = vunpack.c.l.b16 %v23
  %v96 = vunpack.c.h.b16 %v23
  %v97 = vunpack.c.l.b16 %v24
  %v98 = vunpack.c.h.b16 %v24
  %v99 = vunpack.c.l.b16 %v25
  %v100 = vunpack.c.h.b16 %v25
  %v101 = vunpack.c.l.b16 %v26
  %v102 = vunpack.c.h.b16 %v26
  %v103 = vunpack.c.l.b16 %v27
  %v104 = vunpack.c.h.b16 %v27
  %v105 = vunpack.c.l.b16 %v28
  %v106 = vunpack.c.h.b16 %v28
  %v107 = vunpack.c.l.b16 %v29
  %v108 = vunpack.c.h.b16 %v29
  %v109 = vunpack.c.l.b16 %v30
  %v110 = vunpack.c.h.b16 %v30
  %v111 = vpack.c.b16 %v81, %v79
  %v112 = vpack.c.b16 %v82, %v80
  %v113 = vpack.c.b16 %v85, %v83
  %v114 = vpack.c.b16 %v86, %v84
  %v115 = vpack.c.b16 %v89, %v87
  %v116 = vpack.c.b16 %v90, %v88
  %v117 = vpack.c.b16 %v93, %v91
  %v118 = vpack.c.b16 %v94, %v92
  %v119 = vpack.c.b16 %v97, %v95
  %v120 = vpack.c.b16 %v98, %v96
  %v121 = vpack.c.b16 %v101, %v99
  %v122 = vpack.c.b16 %v102, %v100
  %v123 = vpack.c.b16 %v105, %v103
  %v124 = vpack.c.b16 %v106, %v104
  %v125 = vpack.c.b16 %v109, %v107
  %v126 = vpack.c.b16 %v110, %v108
  %v160 = vunpack.c.l.b16 %v31
  %v161 = vunpack.c.l.b16 %v32
  %v162 = vunpack.c.l.b16 %v33
  %v163 = vunpack.c.l.b16 %v34
  %v164 = vunpack.c.l.b16 %v35
  %v165 = vunpack.c.l.b16 %v36
  %v166 = vunpack.c.l.b16 %v37
  %v167 = vunpack.c.l.b16 %v38
  %v168 = vunpack.c.l.b16 %v39
  %v169 = vunpack.c.l.b16 %v40
  %v170 = vunpack.c.l.b16 %v41
  %v171 = vunpack.c.l.b16 %v42
  %v172 = vunpack.c.l.b16 %v43
  %v173 = vunpack.c.l.b16 %v44
  %v174 = vunpack.c.l.b16 %v45
  %v175 = vunpack.c.l.b16 %v46
  %v176 = vunpack.c.l.b16 %v47
  %v177 = vunpack.c.l.b16 %v48
  %v178 = vunpack.c.l.b16 %v49
  %v179 = vunpack.c.l.b16 %v50
  %v180 = vunpack.c.l.b16 %v51
  %v181 = vunpack.c.l.b16 %v52
  %v182 = vunpack.c.l.b16 %v53
  %v183 = vunpack.c.l.b16 %v54
  %v184 = vunpack.c.l.b16 %v55
  %v185 = vpack.c.b16 %v161, %v160
  %v186 = vpack.c.b16 %v163, %v162
  %v187 = vpack.c.b16 %v165, %v164
  %v188 = vpack.c.b16 %v167, %v166
  %v189 = vpack.c.b16 %v169, %v168
  %v190 = vpack.c.b16 %v171, %v170
  %v191 = vpack.c.b16 %v173, %v172
  %v192 = vpack.c.b16 %v175, %v174
  %v193 = vpack.c.b16 %v177, %v176
  %v194 = vpack.c.b16 %v179, %v178
  %v195 = vpack.c.b16 %v181, %v180
  %v196 = vpack.c.b16 %v183, %v182
  %v197 = vpack.c.b16 %v184, %v184
  %vm210 = vcmask 588800
  %v212 = vsel %vm210, %v112, 0
  %v215 = vsel %vm210, %v114, 0
  %v218 = vsel %vm210, %v116, 0
  %v221 = vsel %vm210, %v118, 0
  %v224 = vsel %vm210, %v120, 0
  %v227 = vsel %vm210, %v122, 0
  %v230 = vsel %vm210, %v124, 0
  %v233 = vsel %vm210, %v126, 0
  %vm235 = vcmask 1043456
  %v237 = vsel %vm235, %v197, 0
  %239 = vmatprep.subr.bf16.mxu0 0
  %240 = vmatpush1.bf16.msra.mxu0 %v185
  %241 = vmatprep.subr.bf16.mxu0 0
  %242 = vmatpush1.bf16.msra.mxu0 %v186
  %243 = vmatprep.subr.bf16.mxu0 0
  %244 = vmatpush1.bf16.msra.mxu0 %v187
  %245 = vmatprep.subr.bf16.mxu0 0
  %246 = vmatpush1.bf16.msra.mxu0 %v188
  %247 = vmatprep.subr.bf16.mxu0 0
  %248 = vmatpush1.bf16.msra.mxu0 %v189
  %249 = vmatprep.subr.bf16.mxu0 0
  %250 = vmatpush1.bf16.msra.mxu0 %v190
  %251 = vmatprep.subr.bf16.mxu0 0
  %252 = vmatpush1.bf16.msra.mxu0 %v191
  %253 = vmatprep.subr.bf16.mxu0 0
  %254 = vmatpush1.bf16.msra.mxu0 %v192
  %255 = vmatprep.subr.bf16.mxu0 0
  %256 = vmatpush1.bf16.msra.mxu0 %v193
  %257 = vmatprep.subr.bf16.mxu0 0
  %258 = vmatpush1.bf16.msra.mxu0 %v194
  %259 = vmatprep.subr.bf16.mxu0 0
  %260 = vmatpush1.bf16.msra.mxu0 %v195
  %261 = vmatprep.subr.bf16.mxu0 0
  %262 = vmatpush1.bf16.msra.mxu0 %v196
  %263 = vmatprep.subr.bf16.mxu0 0
  %264 = vmatpush1.bf16.msra.mxu0 %v237
  %265 = vmatprep.subr.bf16.mxu0 0
  %266 = vmatpush1.bf16.msra.mxu0 0
  %267 = vmatprep.subr.bf16.mxu0 0
  %268 = vmatpush1.bf16.msra.mxu0 0
  %269 = vmatprep.subr.bf16.mxu0 0
  %270 = vmatpush1.bf16.msra.mxu0 0
  %271 = vmatprep.mubr.bf16.mxu0 %v212
  %272 = vmatmul.mubr.bf16.gmra.mrb[0].mxu0 %v111
  %v273 = vpop.f32.mrb[0].mxu0
  %v274 = vadd.f32 %v61, %v273
  %v275 = vpop.f32.mrb[0].mxu0
  %v276 = vpop.f32.mrb[0].mxu0
  %v277 = vadd.f32 %v61, %v276
  %v278 = vpop.f32.mrb[0].mxu0
  %279 = vmatprep.mubr.bf16.mxu0 %v215
  %280 = vmatmul.mubr.bf16.gmra.mrb[0].mxu0 %v113
  %v281 = vpop.f32.mrb[0].mxu0
  %v282 = vadd.f32 %v61, %v281
  %v283 = vpop.f32.mrb[0].mxu0
  %v284 = vpop.f32.mrb[0].mxu0
  %v285 = vadd.f32 %v61, %v284
  %v286 = vpop.f32.mrb[0].mxu0
  %287 = vmatprep.mubr.bf16.mxu0 %v218
  %288 = vmatmul.mubr.bf16.gmra.mrb[0].mxu0 %v115
  %v289 = vpop.f32.mrb[0].mxu0
  %v290 = vadd.f32 %v61, %v289
  %v291 = vpop.f32.mrb[0].mxu0
  %v292 = vpop.f32.mrb[0].mxu0
  %v293 = vadd.f32 %v61, %v292
  %v294 = vpop.f32.mrb[0].mxu0
  %295 = vmatprep.mubr.bf16.mxu0 %v221
  %296 = vmatmul.mubr.bf16.gmra.mrb[0].mxu0 %v117
  %v297 = vpop.f32.mrb[0].mxu0
  %v298 = vadd.f32 %v61, %v297
  %v299 = vpop.f32.mrb[0].mxu0
  %v300 = vpop.f32.mrb[0].mxu0
  %v301 = vadd.f32 %v61, %v300
  %v302 = vpop.f32.mrb[0].mxu0
  %303 = vmatprep.mubr.bf16.mxu0 %v224
  %304 = vmatmul.mubr.bf16.gmra.mrb[0].mxu0 %v119
  %v305 = vpop.f32.mrb[0].mxu0
  %v306 = vadd.f32 %v61, %v305
  %v307 = vpop.f32.mrb[0].mxu0
  %v308 = vpop.f32.mrb[0].mxu0
  %v309 = vadd.f32 %v61, %v308
  %v310 = vpop.f32.mrb[0].mxu0
  %311 = vmatprep.mubr.bf16.mxu0 %v227
  %312 = vmatmul.mubr.bf16.gmra.mrb[0].mxu0 %v121
  %v313 = vpop.f32.mrb[0].mxu0
  %v314 = vadd.f32 %v61, %v313
  %v315 = vpop.f32.mrb[0].mxu0
  %v316 = vpop.f32.mrb[0].mxu0
  %v317 = vadd.f32 %v61, %v316
  %v318 = vpop.f32.mrb[0].mxu0
  %319 = vmatprep.mubr.bf16.mxu0 %v230
  %320 = vmatmul.mubr.bf16.gmra.mrb[0].mxu0 %v123
  %v321 = vpop.f32.mrb[0].mxu0
  %v322 = vadd.f32 %v61, %v321
  %v323 = vpop.f32.mrb[0].mxu0
  %v324 = vpop.f32.mrb[0].mxu0
  %v325 = vadd.f32 %v61, %v324
  %v326 = vpop.f32.mrb[0].mxu0
  %327 = vmatprep.mubr.bf16.mxu0 %v233
  %328 = vmatmul.mubr.bf16.gmra.mrb[0].mxu0 %v125
  %v329 = vpop.f32.mrb[0].mxu0
  %v330 = vadd.f32 %v61, %v329
  %v331 = vpop.f32.mrb[0].mxu0
  %v332 = vpop.f32.mrb[0].mxu0
  %v333 = vadd.f32 %v61, %v332
  %v334 = vpop.f32.mrb[0].mxu0
  %335 = vdwg.mxu0
  %v336 = vmax.f32 %v274, 0.0
  %v337 = vmax.f32 %v277, 0.0
  %v338 = vmax.f32 %v282, 0.0
  %v339 = vmax.f32 %v285, 0.0
  %v340 = vmax.f32 %v290, 0.0
  %v341 = vmax.f32 %v293, 0.0
  %v342 = vmax.f32 %v298, 0.0
  %v343 = vmax.f32 %v301, 0.0
  %v344 = vmax.f32 %v306, 0.0
  %v345 = vmax.f32 %v309, 0.0
  %v346 = vmax.f32 %v314, 0.0
  %v347 = vmax.f32 %v317, 0.0
  %v348 = vmax.f32 %v322, 0.0
  %v349 = vmax.f32 %v325, 0.0
  %v350 = vmax.f32 %v330, 0.0
  %v351 = vmax.f32 %v333, 0.0
  %v352 = vpack.c.bf16 %v337, %v336
  %v353 = vpack.c.bf16 %v339, %v338
  %v354 = vpack.c.bf16 %v341, %v340
  %v355 = vpack.c.bf16 %v343, %v342
  %v356 = vpack.c.bf16 %v345, %v344
  %v357 = vpack.c.bf16 %v347, %v346
  %v358 = vpack.c.bf16 %v349, %v348
  %v359 = vpack.c.bf16 %v351, %v350
  %v368 = vunpack.c.l.b16 %v352
  %v369 = vunpack.c.h.b16 %v352
  %v370 = vunpack.c.l.b16 %v353
  %v371 = vunpack.c.h.b16 %v353
  %v372 = vunpack.c.l.b16 %v354
  %v373 = vunpack.c.h.b16 %v354
  %v374 = vunpack.c.l.b16 %v355
  %v375 = vunpack.c.h.b16 %v355
  %v376 = vunpack.c.l.b16 %v356
  %v377 = vunpack.c.h.b16 %v356
  %v378 = vunpack.c.l.b16 %v357
  %v379 = vunpack.c.h.b16 %v357
  %v380 = vunpack.c.l.b16 %v358
  %v381 = vunpack.c.h.b16 %v358
  %v382 = vunpack.c.l.b16 %v359
  %v383 = vunpack.c.h.b16 %v359
  %v384 = vpack.c.b16 %v368, %v368
  %v385 = vpack.c.b16 %v369, %v369
  %v386 = vpack.c.b16 %v370, %v370
  %v387 = vpack.c.b16 %v371, %v371
  %v388 = vpack.c.b16 %v372, %v372
  %v389 = vpack.c.b16 %v373, %v373
  %v390 = vpack.c.b16 %v374, %v374
  %v391 = vpack.c.b16 %v375, %v375
  %v392 = vpack.c.b16 %v376, %v376
  %v393 = vpack.c.b16 %v377, %v377
  %v394 = vpack.c.b16 %v378, %v378
  %v395 = vpack.c.b16 %v379, %v379
  %v396 = vpack.c.b16 %v380, %v380
  %v397 = vpack.c.b16 %v381, %v381
  %v398 = vpack.c.b16 %v382, %v382
  %v399 = vpack.c.b16 %v383, %v383
  %416 = vst [vmem:[%s3] sm:$0xf] %v384
  %417 = vst [vmem:[%s3 + $0x4] sm:$0xf] %v385
  %418 = vst [vmem:[%s3 + $0x8] sm:$0xf] %v386
  %419 = vst [vmem:[%s3 + $0xc] sm:$0xf] %v387
  %420 = vst [vmem:[%s3 + $0x10] sm:$0xf] %v388
  %421 = vst [vmem:[%s3 + $0x14] sm:$0xf] %v389
  %422 = vst [vmem:[%s3 + $0x18] sm:$0xf] %v390
  %423 = vst [vmem:[%s3 + $0x1c] sm:$0xf] %v391
  %424 = vst [vmem:[%s3 + $0x20] sm:$0xf] %v392
  %425 = vst [vmem:[%s3 + $0x24] sm:$0xf] %v393
  %426 = vst [vmem:[%s3 + $0x28] sm:$0xf] %v394
  %427 = vst [vmem:[%s3 + $0x2c] sm:$0xf] %v395
  %428 = vst [vmem:[%s3 + $0x30] sm:$0xf] %v396
  %429 = vst [vmem:[%s3 + $0x34] sm:$0xf] %v397
  %430 = vst [vmem:[%s3 + $0x38] sm:$0xf] %v398
  %431 = vst [vmem:[%s3 + $0x3c] sm:$0xf] %v399
  // Predicated region
  $region14: #{motion_compensation.10} parent=0 // pred_check
    _
  $region15: #{motion_compensation.10} parent=0 // pred_check_branch
    %433 = sbr.rel (0) target = $region17
  $region16: #{motion_compensation.10} parent=0 // pred_region
    _
  $region17: #{motion_compensation.10} parent=0 // pred_fallthru
    _
  // Predicated region
  $region18: #{motion_compensation.10} parent=0 // pred_check
    _
  $region19: #{motion_compensation.10} parent=0 // pred_check_branch
    %435 = sbr.rel (0) target = $region21
  $region20: #{motion_compensation.10} parent=0 // pred_region
    _
  $region21: #{motion_compensation.10} parent=0 // pred_fallthru
    _

// kernel: motion_compensation.11
$region0: #{motion_compensation.11}
  #allocation0 [shape = 'u32[]', space=smem, size = 0x4, offset = 0x4, fixed_abs, tag = 'smem constant byte address 0x4 - core index']
  #allocation1 [shape = 'u32[144,128]{1,0:T(1,128)}', space=vmem, size = 0x12000, scoped, tag = 'internal scratch']
  %s0 = inlined_call_operand.vmem [shape: bf16[128,216], index: 0, kind: input, shape index: {}]
  %s1 = inlined_call_operand.vmem [shape: bf16[216,128], index: 1, kind: input, shape index: {}]
  %s2 = inlined_call_operand.vmem [shape: f32[1,128], index: 2, kind: input, shape index: {}]
  %s3 = inlined_call_operand.vmem [shape: bf16[128,128], index: 3, kind: output, shape index: {}]
  %s4 = sld [smem:[#allocation0]]
  $region22: #{motion_compensation.11} parent=0
    _
  %s6 = ssub.s32 1, %s4
  %s7 = scalar_select 0, %s6, %s4
  // Predicated region
  $region2: #{motion_compensation.11} parent=0 // pred_check
    _
  $region3: #{motion_compensation.11} parent=0 // pred_check_branch
    %9 = sbr.rel (0) target = $region5
  $region4: #{motion_compensation.11} parent=0 // pred_region
    _
  $region5: #{motion_compensation.11} parent=0 // pred_fallthru
    _
  // Predicated region
  $region6: #{motion_compensation.11} parent=0 // pred_check
    _
  $region7: #{motion_compensation.11} parent=0 // pred_check_branch
    %11 = sbr.rel (0) target = $region9
  $region8: #{motion_compensation.11} parent=0 // pred_region
    _
  $region9: #{motion_compensation.11} parent=0 // pred_fallthru
    _
  // Predicated region
  $region10: #{motion_compensation.11} parent=0 // pred_check
    _
  $region11: #{motion_compensation.11} parent=0 // pred_check_branch
    %13 = sbr.rel (0) target = $region13
  $region12: #{motion_compensation.11} parent=0 // pred_region
    _
  $region13: #{motion_compensation.11} parent=0 // pred_fallthru
    _
  %v15 = vld [vmem:[%s0] sm:$0xff]
  %v16 = vld [vmem:[%s0 + $0x8] sm:$0xff]
  %v17 = vld [vmem:[%s0 + $0x10] sm:$0xff]
  %v18 = vld [vmem:[%s0 + $0x18] sm:$0xff]
  %v19 = vld [vmem:[%s0 + $0x20] sm:$0xff]
  %v20 = vld [vmem:[%s0 + $0x28] sm:$0xff]
  %v21 = vld [vmem:[%s0 + $0x30] sm:$0xff]
  %v22 = vld [vmem:[%s0 + $0x38] sm:$0xff]
  %v23 = vld [vmem:[%s0 + $0x40] sm:$0xff]
  %v24 = vld [vmem:[%s0 + $0x48] sm:$0xff]
  %v25 = vld [vmem:[%s0 + $0x50] sm:$0xff]
  %v26 = vld [vmem:[%s0 + $0x58] sm:$0xff]
  %v27 = vld [vmem:[%s0 + $0x60] sm:$0xff]
  %v28 = vld [vmem:[%s0 + $0x68] sm:$0xff]
  %v29 = vld [vmem:[%s0 + $0x70] sm:$0xff]
  %v30 = vld [vmem:[%s0 + $0x78] sm:$0xff]
  %v31 = vld [vmem:[%s1] sm:$0xf]
  %v32 = vld [vmem:[%s1 + $0x4] sm:$0xf]
  %v33 = vld [vmem:[%s1 + $0x8] sm:$0xf]
  %v34 = vld [vmem:[%s1 + $0xc] sm:$0xf]
  %v35 = vld [vmem:[%s1 + $0x10] sm:$0xf]
  %v36 = vld [vmem:[%s1 + $0x14] sm:$0xf]
  %v37 = vld [vmem:[%s1 + $0x18] sm:$0xf]
  %v38 = vld [vmem:[%s1 + $0x1c] sm:$0xf]
  %v39 = vld [vmem:[%s1 + $0x20] sm:$0xf]
  %v40 = vld [vmem:[%s1 + $0x24] sm:$0xf]
  %v41 = vld [vmem:[%s1 + $0x28] sm:$0xf]
  %v42 = vld [vmem:[%s1 + $0x2c] sm:$0xf]
  %v43 = vld [vmem:[%s1 + $0x30] sm:$0xf]
  %v44 = vld [vmem:[%s1 + $0x34] sm:$0xf]
  %v45 = vld [vmem:[%s1 + $0x38] sm:$0xf]
  %v46 = vld [vmem:[%s1 + $0x3c] sm:$0xf]
  %v47 = vld [vmem:[%s1 + $0x40] sm:$0xf]
  %v48 = vld [vmem:[%s1 + $0x44] sm:$0xf]
  %v49 = vld [vmem:[%s1 + $0x48] sm:$0xf]
  %v50 = vld [vmem:[%s1 + $0x4c] sm:$0xf]
  %v51 = vld [vmem:[%s1 + $0x50] sm:$0xf]
  %v52 = vld [vmem:[%s1 + $0x54] sm:$0xf]
  %v53 = vld [vmem:[%s1 + $0x58] sm:$0xf]
  %v54 = vld [vmem:[%s1 + $0x5c] sm:$0xf]
  %v55 = vld [vmem:[%s1 + $0x60] sm:$0xf]
  %v56 = vld [vmem:[%s1 + $0x64] sm:$0xf]
  %v57 = vld [vmem:[%s1 + $0x68] sm:$0xf]
  %v58 = vld [vmem:[%s2] sm:$0x1]
  %v60 = vlaneseq
  %v61 = vshrl.u32 %v60, 7
  %v62 = vsub.s32 0, %v61
  %v63 = vrot.slane %v58, %v62
  %v81 = vunpack.c.l.b16 %v15
  %v82 = vunpack.c.h.b16 %v15
  %v83 = vunpack.c.l.b16 %v16
  %v84 = vunpack.c.h.b16 %v16
  %v85 = vunpack.c.l.b16 %v17
  %v86 = vunpack.c.h.b16 %v17
  %v87 = vunpack.c.l.b16 %v18
  %v88 = vunpack.c.h.b16 %v18
  %v89 = vunpack.c.l.b16 %v19
  %v90 = vunpack.c.h.b16 %v19
  %v91 = vunpack.c.l.b16 %v20
  %v92 = vunpack.c.h.b16 %v20
  %v93 = vunpack.c.l.b16 %v21
  %v94 = vunpack.c.h.b16 %v21
  %v95 = vunpack.c.l.b16 %v22
  %v96 = vunpack.c.h.b16 %v22
  %v97 = vunpack.c.l.b16 %v23
  %v98 = vunpack.c.h.b16 %v23
  %v99 = vunpack.c.l.b16 %v24
  %v100 = vunpack.c.h.b16 %v24
  %v101 = vunpack.c.l.b16 %v25
  %v102 = vunpack.c.h.b16 %v25
  %v103 = vunpack.c.l.b16 %v26
  %v104 = vunpack.c.h.b16 %v26
  %v105 = vunpack.c.l.b16 %v27
  %v106 = vunpack.c.h.b16 %v27
  %v107 = vunpack.c.l.b16 %v28
  %v108 = vunpack.c.h.b16 %v28
  %v109 = vunpack.c.l.b16 %v29
  %v110 = vunpack.c.h.b16 %v29
  %v111 = vunpack.c.l.b16 %v30
  %v112 = vunpack.c.h.b16 %v30
  %v113 = vpack.c.b16 %v83, %v81
  %v114 = vpack.c.b16 %v84, %v82
  %v115 = vpack.c.b16 %v87, %v85
  %v116 = vpack.c.b16 %v88, %v86
  %v117 = vpack.c.b16 %v91, %v89
  %v118 = vpack.c.b16 %v92, %v90
  %v119 = vpack.c.b16 %v95, %v93
  %v120 = vpack.c.b16 %v96, %v94
  %v121 = vpack.c.b16 %v99, %v97
  %v122 = vpack.c.b16 %v100, %v98
  %v123 = vpack.c.b16 %v103, %v101
  %v124 = vpack.c.b16 %v104, %v102
  %v125 = vpack.c.b16 %v107, %v105
  %v126 = vpack.c.b16 %v108, %v106
  %v127 = vpack.c.b16 %v111, %v109
  %v128 = vpack.c.b16 %v112, %v110
  %v164 = vunpack.c.l.b16 %v31
  %v165 = vunpack.c.l.b16 %v32
  %v166 = vunpack.c.l.b16 %v33
  %v167 = vunpack.c.l.b16 %v34
  %v168 = vunpack.c.l.b16 %v35
  %v169 = vunpack.c.l.b16 %v36
  %v170 = vunpack.c.l.b16 %v37
  %v171 = vunpack.c.l.b16 %v38
  %v172 = vunpack.c.l.b16 %v39
  %v173 = vunpack.c.l.b16 %v40
  %v174 = vunpack.c.l.b16 %v41
  %v175 = vunpack.c.l.b16 %v42
  %v176 = vunpack.c.l.b16 %v43
  %v177 = vunpack.c.l.b16 %v44
  %v178 = vunpack.c.l.b16 %v45
  %v179 = vunpack.c.l.b16 %v46
  %v180 = vunpack.c.l.b16 %v47
  %v181 = vunpack.c.l.b16 %v48
  %v182 = vunpack.c.l.b16 %v49
  %v183 = vunpack.c.l.b16 %v50
  %v184 = vunpack.c.l.b16 %v51
  %v185 = vunpack.c.l.b16 %v52
  %v186 = vunpack.c.l.b16 %v53
  %v187 = vunpack.c.l.b16 %v54
  %v188 = vunpack.c.l.b16 %v55
  %v189 = vunpack.c.l.b16 %v56
  %v190 = vunpack.c.l.b16 %v57
  %v191 = vpack.c.b16 %v165, %v164
  %v192 = vpack.c.b16 %v167, %v166
  %v193 = vpack.c.b16 %v169, %v168
  %v194 = vpack.c.b16 %v171, %v170
  %v195 = vpack.c.b16 %v173, %v172
  %v196 = vpack.c.b16 %v175, %v174
  %v197 = vpack.c.b16 %v177, %v176
  %v198 = vpack.c.b16 %v179, %v178
  %v199 = vpack.c.b16 %v181, %v180
  %v200 = vpack.c.b16 %v183, %v182
  %v201 = vpack.c.b16 %v185, %v184
  %v202 = vpack.c.b16 %v187, %v186
  %v203 = vpack.c.b16 %v189, %v188
  %v204 = vpack.c.b16 %v190, %v190
  %vm218 = vcmask 719872
  %v220 = vsel %vm218, %v114, 0
  %v223 = vsel %vm218, %v116, 0
  %v226 = vsel %vm218, %v118, 0
  %v229 = vsel %vm218, %v120, 0
  %v232 = vsel %vm218, %v122, 0
  %v235 = vsel %vm218, %v124, 0
  %v238 = vsel %vm218, %v126, 0
  %v241 = vsel %vm218, %v128, 0
  %vm243 = vcmask 1043456
  %v245 = vsel %vm243, %v204, 0
  %247 = vmatprep.subr.bf16.mxu0 0
  %248 = vmatpush1.bf16.msra.mxu0 %v191
  %249 = vmatprep.subr.bf16.mxu0 0
  %250 = vmatpush1.bf16.msra.mxu0 %v192
  %251 = vmatprep.subr.bf16.mxu0 0
  %252 = vmatpush1.bf16.msra.mxu0 %v193
  %253 = vmatprep.subr.bf16.mxu0 0
  %254 = vmatpush1.bf16.msra.mxu0 %v194
  %255 = vmatprep.subr.bf16.mxu0 0
  %256 = vmatpush1.bf16.msra.mxu0 %v195
  %257 = vmatprep.subr.bf16.mxu0 0
  %258 = vmatpush1.bf16.msra.mxu0 %v196
  %259 = vmatprep.subr.bf16.mxu0 0
  %260 = vmatpush1.bf16.msra.mxu0 %v197
  %261 = vmatprep.subr.bf16.mxu0 0
  %262 = vmatpush1.bf16.msra.mxu0 %v198
  %263 = vmatprep.subr.bf16.mxu0 0
  %264 = vmatpush1.bf16.msra.mxu0 %v199
  %265 = vmatprep.subr.bf16.mxu0 0
  %266 = vmatpush1.bf16.msra.mxu0 %v200
  %267 = vmatprep.subr.bf16.mxu0 0
  %268 = vmatpush1.bf16.msra.mxu0 %v201
  %269 = vmatprep.subr.bf16.mxu0 0
  %270 = vmatpush1.bf16.msra.mxu0 %v202
  %271 = vmatprep.subr.bf16.mxu0 0
  %272 = vmatpush1.bf16.msra.mxu0 %v203
  %273 = vmatprep.subr.bf16.mxu0 0
  %274 = vmatpush1.bf16.msra.mxu0 %v245
  %275 = vmatprep.subr.bf16.mxu0 0
  %276 = vmatpush1.bf16.msra.mxu0 0
  %277 = vmatprep.subr.bf16.mxu0 0
  %278 = vmatpush1.bf16.msra.mxu0 0
  %279 = vmatprep.mubr.bf16.mxu0 %v220
  %280 = vmatmul.mubr.bf16.gmra.mrb[0].mxu0 %v113
  %v281 = vpop.f32.mrb[0].mxu0
  %v282 = vadd.f32 %v63, %v281
  %v283 = vpop.f32.mrb[0].mxu0
  %v284 = vpop.f32.mrb[0].mxu0
  %v285 = vadd.f32 %v63, %v284
  %v286 = vpop.f32.mrb[0].mxu0
  %287 = vmatprep.mubr.bf16.mxu0 %v223
  %288 = vmatmul.mubr.bf16.gmra.mrb[0].mxu0 %v115
  %v289 = vpop.f32.mrb[0].mxu0
  %v290 = vadd.f32 %v63, %v289
  %v291 = vpop.f32.mrb[0].mxu0
  %v292 = vpop.f32.mrb[0].mxu0
  %v293 = vadd.f32 %v63, %v292
  %v294 = vpop.f32.mrb[0].mxu0
  %295 = vmatprep.mubr.bf16.mxu0 %v226
  %296 = vmatmul.mubr.bf16.gmra.mrb[0].mxu0 %v117
  %v297 = vpop.f32.mrb[0].mxu0
  %v298 = vadd.f32 %v63, %v297
  %v299 = vpop.f32.mrb[0].mxu0
  %v300 = vpop.f32.mrb[0].mxu0
  %v301 = vadd.f32 %v63, %v300
  %v302 = vpop.f32.mrb[0].mxu0
  %303 = vmatprep.mubr.bf16.mxu0 %v229
  %304 = vmatmul.mubr.bf16.gmra.mrb[0].mxu0 %v119
  %v305 = vpop.f32.mrb[0].mxu0
  %v306 = vadd.f32 %v63, %v305
  %v307 = vpop.f32.mrb[0].mxu0
  %v308 = vpop.f32.mrb[0].mxu0
  %v309 = vadd.f32 %v63, %v308
  %v310 = vpop.f32.mrb[0].mxu0
  %311 = vmatprep.mubr.bf16.mxu0 %v232
  %312 = vmatmul.mubr.bf16.gmra.mrb[0].mxu0 %v121
  %v313 = vpop.f32.mrb[0].mxu0
  %v314 = vadd.f32 %v63, %v313
  %v315 = vpop.f32.mrb[0].mxu0
  %v316 = vpop.f32.mrb[0].mxu0
  %v317 = vadd.f32 %v63, %v316
  %v318 = vpop.f32.mrb[0].mxu0
  %319 = vmatprep.mubr.bf16.mxu0 %v235
  %320 = vmatmul.mubr.bf16.gmra.mrb[0].mxu0 %v123
  %v321 = vpop.f32.mrb[0].mxu0
  %v322 = vadd.f32 %v63, %v321
  %v323 = vpop.f32.mrb[0].mxu0
  %v324 = vpop.f32.mrb[0].mxu0
  %v325 = vadd.f32 %v63, %v324
  %v326 = vpop.f32.mrb[0].mxu0
  %327 = vmatprep.mubr.bf16.mxu0 %v238
  %328 = vmatmul.mubr.bf16.gmra.mrb[0].mxu0 %v125
  %v329 = vpop.f32.mrb[0].mxu0
  %v330 = vadd.f32 %v63, %v329
  %v331 = vpop.f32.mrb[0].mxu0
  %v332 = vpop.f32.mrb[0].mxu0
  %v333 = vadd.f32 %v63, %v332
  %v334 = vpop.f32.mrb[0].mxu0
  %335 = vmatprep.mubr.bf16.mxu0 %v241
  %336 = vmatmul.mubr.bf16.gmra.mrb[0].mxu0 %v127
  %v337 = vpop.f32.mrb[0].mxu0
  %v338 = vadd.f32 %v63, %v337
  %v339 = vpop.f32.mrb[0].mxu0
  %v340 = vpop.f32.mrb[0].mxu0
  %v341 = vadd.f32 %v63, %v340
  %v342 = vpop.f32.mrb[0].mxu0
  %343 = vdwg.mxu0
  %v344 = vmax.f32 %v282, 0.0
  %v345 = vmax.f32 %v285, 0.0
  %v346 = vmax.f32 %v290, 0.0
  %v347 = vmax.f32 %v293, 0.0
  %v348 = vmax.f32 %v298, 0.0
  %v349 = vmax.f32 %v301, 0.0
  %v350 = vmax.f32 %v306, 0.0
  %v351 = vmax.f32 %v309, 0.0
  %v352 = vmax.f32 %v314, 0.0
  %v353 = vmax.f32 %v317, 0.0
  %v354 = vmax.f32 %v322, 0.0
  %v355 = vmax.f32 %v325, 0.0
  %v356 = vmax.f32 %v330, 0.0
  %v357 = vmax.f32 %v333, 0.0
  %v358 = vmax.f32 %v338, 0.0
  %v359 = vmax.f32 %v341, 0.0
  %v360 = vpack.c.bf16 %v345, %v344
  %v361 = vpack.c.bf16 %v347, %v346
  %v362 = vpack.c.bf16 %v349, %v348
  %v363 = vpack.c.bf16 %v351, %v350
  %v364 = vpack.c.bf16 %v353, %v352
  %v365 = vpack.c.bf16 %v355, %v354
  %v366 = vpack.c.bf16 %v357, %v356
  %v367 = vpack.c.bf16 %v359, %v358
  %v376 = vunpack.c.l.b16 %v360
  %v377 = vunpack.c.h.b16 %v360
  %v378 = vunpack.c.l.b16 %v361
  %v379 = vunpack.c.h.b16 %v361
  %v380 = vunpack.c.l.b16 %v362
  %v381 = vunpack.c.h.b16 %v362
  %v382 = vunpack.c.l.b16 %v363
  %v383 = vunpack.c.h.b16 %v363
  %v384 = vunpack.c.l.b16 %v364
  %v385 = vunpack.c.h.b16 %v364
  %v386 = vunpack.c.l.b16 %v365
  %v387 = vunpack.c.h.b16 %v365
  %v388 = vunpack.c.l.b16 %v366
  %v389 = vunpack.c.h.b16 %v366
  %v390 = vunpack.c.l.b16 %v367
  %v391 = vunpack.c.h.b16 %v367
  %v392 = vpack.c.b16 %v376, %v376
  %v393 = vpack.c.b16 %v377, %v377
  %v394 = vpack.c.b16 %v378, %v378
  %v395 = vpack.c.b16 %v379, %v379
  %v396 = vpack.c.b16 %v380, %v380
  %v397 = vpack.c.b16 %v381, %v381
  %v398 = vpack.c.b16 %v382, %v382
  %v399 = vpack.c.b16 %v383, %v383
  %v400 = vpack.c.b16 %v384, %v384
  %v401 = vpack.c.b16 %v385, %v385
  %v402 = vpack.c.b16 %v386, %v386
  %v403 = vpack.c.b16 %v387, %v387
  %v404 = vpack.c.b16 %v388, %v388
  %v405 = vpack.c.b16 %v389, %v389
  %v406 = vpack.c.b16 %v390, %v390
  %v407 = vpack.c.b16 %v391, %v391
  %424 = vst [vmem:[%s3] sm:$0xf] %v392
  %425 = vst [vmem:[%s3 + $0x4] sm:$0xf] %v393
  %426 = vst [vmem:[%s3 + $0x8] sm:$0xf] %v394
  %427 = vst [vmem:[%s3 + $0xc] sm:$0xf] %v395
  %428 = vst [vmem:[%s3 + $0x10] sm:$0xf] %v396
  %429 = vst [vmem:[%s3 + $0x14] sm:$0xf] %v397
  %430 = vst [vmem:[%s3 + $0x18] sm:$0xf] %v398
  %431 = vst [vmem:[%s3 + $0x1c] sm:$0xf] %v399
  %432 = vst [vmem:[%s3 + $0x20] sm:$0xf] %v400
  %433 = vst [vmem:[%s3 + $0x24] sm:$0xf] %v401
  %434 = vst [vmem:[%s3 + $0x28] sm:$0xf] %v402
  %435 = vst [vmem:[%s3 + $0x2c] sm:$0xf] %v403
  %436 = vst [vmem:[%s3 + $0x30] sm:$0xf] %v404
  %437 = vst [vmem:[%s3 + $0x34] sm:$0xf] %v405
  %438 = vst [vmem:[%s3 + $0x38] sm:$0xf] %v406
  %439 = vst [vmem:[%s3 + $0x3c] sm:$0xf] %v407
  // Predicated region
  $region14: #{motion_compensation.11} parent=0 // pred_check
    _
  $region15: #{motion_compensation.11} parent=0 // pred_check_branch
    %441 = sbr.rel (0) target = $region17
  $region16: #{motion_compensation.11} parent=0 // pred_region
    _
  $region17: #{motion_compensation.11} parent=0 // pred_fallthru
    _
  // Predicated region
  $region18: #{motion_compensation.11} parent=0 // pred_check
    _
  $region19: #{motion_compensation.11} parent=0 // pred_check_branch
    %443 = sbr.rel (0) target = $region21
  $region20: #{motion_compensation.11} parent=0 // pred_region
    _
  $region21: #{motion_compensation.11} parent=0 // pred_fallthru
    _

// kernel: motion_compensation.12
$region0: #{motion_compensation.12}
  #allocation0 [shape = 'u32[]', space=smem, size = 0x4, offset = 0x4, fixed_abs, tag = 'smem constant byte address 0x4 - core index']
  #allocation1 [shape = 'u32[144,128]{1,0:T(1,128)}', space=vmem, size = 0x12000, scoped, tag = 'internal scratch']
  %s0 = inlined_call_operand.vmem [shape: bf16[32,600], index: 0, kind: input, shape index: {}]
  %s1 = inlined_call_operand.vmem [shape: bf16[600,128], index: 1, kind: input, shape index: {}]
  %s2 = inlined_call_operand.vmem [shape: f32[1,128], index: 2, kind: input, shape index: {}]
  %s3 = inlined_call_operand.vmem [shape: bf16[32,128], index: 3, kind: output, shape index: {}]
  %s4 = sld [smem:[#allocation0]]
  $region22: #{motion_compensation.12} parent=0
    _
  %s6 = ssub.s32 1, %s4
  %s7 = scalar_select 0, %s6, %s4
  // Predicated region
  $region2: #{motion_compensation.12} parent=0 // pred_check
    _
  $region3: #{motion_compensation.12} parent=0 // pred_check_branch
    %9 = sbr.rel (0) target = $region5
  $region4: #{motion_compensation.12} parent=0 // pred_region
    _
  $region5: #{motion_compensation.12} parent=0 // pred_fallthru
    _
  // Predicated region
  $region6: #{motion_compensation.12} parent=0 // pred_check
    _
  $region7: #{motion_compensation.12} parent=0 // pred_check_branch
    %11 = sbr.rel (0) target = $region9
  $region8: #{motion_compensation.12} parent=0 // pred_region
    _
  $region9: #{motion_compensation.12} parent=0 // pred_fallthru
    _
  // Predicated region
  $region10: #{motion_compensation.12} parent=0 // pred_check
    _
  $region11: #{motion_compensation.12} parent=0 // pred_check_branch
    %13 = sbr.rel (0) target = $region13
  $region12: #{motion_compensation.12} parent=0 // pred_region
    _
  $region13: #{motion_compensation.12} parent=0 // pred_fallthru
    _
  %v15 = vld [vmem:[%s0] sm:$0xff]
  %v16 = vld [vmem:[%s0 + $0x8] sm:$0xff]
  %v17 = vld [vmem:[%s0 + $0x10] sm:$0xf]
  %v18 = vld [vmem:[%s0 + $0x14] sm:$0xff]
  %v19 = vld [vmem:[%s0 + $0x1c] sm:$0xff]
  %v20 = vld [vmem:[%s0 + $0x24] sm:$0xf]
  %v21 = vld [vmem:[%s0 + $0x28] sm:$0xff]
  %v22 = vld [vmem:[%s0 + $0x30] sm:$0xff]
  %v23 = vld [vmem:[%s0 + $0x38] sm:$0xf]
  %v24 = vld [vmem:[%s0 + $0x3c] sm:$0xff]
  %v25 = vld [vmem:[%s0 + $0x44] sm:$0xff]
  %v26 = vld [vmem:[%s0 + $0x4c] sm:$0xf]
  %v27 = vld [vmem:[%s1] sm:$0xf]
  %v28 = vld [vmem:[%s1 + $0x4] sm:$0xf]
  %v29 = vld [vmem:[%s1 + $0x8] sm:$0xf]
  %v30 = vld [vmem:[%s1 + $0xc] sm:$0xf]
  %v31 = vld [vmem:[%s1 + $0x10] sm:$0xf]
  %v32 = vld [vmem:[%s1 + $0x14] sm:$0xf]
  %v33 = vld [vmem:[%s1 + $0x18] sm:$0xf]
  %v34 = vld [vmem:[%s1 + $0x1c] sm:$0xf]
  %v35 = vld [vmem:[%s1 + $0x20] sm:$0xf]
  %v36 = vld [vmem:[%s1 + $0x24] sm:$0xf]
  %v37 = vld [vmem:[%s1 + $0x28] sm:$0xf]
  %v38 = vld [vmem:[%s1 + $0x2c] sm:$0xf]
  %v39 = vld [vmem:[%s1 + $0x30] sm:$0xf]
  %v40 = vld [vmem:[%s1 + $0x34] sm:$0xf]
  %v41 = vld [vmem:[%s1 + $0x38] sm:$0xf]
  %v42 = vld [vmem:[%s1 + $0x3c] sm:$0xf]
  %v43 = vld [vmem:[%s1 + $0x40] sm:$0xf]
  %v44 = vld [vmem:[%s1 + $0x44] sm:$0xf]
  %v45 = vld [vmem:[%s1 + $0x48] sm:$0xf]
  %v46 = vld [vmem:[%s1 + $0x4c] sm:$0xf]
  %v47 = vld [vmem:[%s1 + $0x50] sm:$0xf]
  %v48 = vld [vmem:[%s1 + $0x54] sm:$0xf]
  %v49 = vld [vmem:[%s1 + $0x58] sm:$0xf]
  %v50 = vld [vmem:[%s1 + $0x5c] sm:$0xf]
  %v51 = vld [vmem:[%s1 + $0x60] sm:$0xf]
  %v52 = vld [vmem:[%s1 + $0x64] sm:$0xf]
  %v53 = vld [vmem:[%s1 + $0x68] sm:$0xf]
  %v54 = vld [vmem:[%s1 + $0x6c] sm:$0xf]
  %v55 = vld [vmem:[%s1 + $0x70] sm:$0xf]
  %v56 = vld [vmem:[%s1 + $0x74] sm:$0xf]
  %v57 = vld [vmem:[%s1 + $0x78] sm:$0xf]
  %v58 = vld [vmem:[%s1 + $0x7c] sm:$0xf]
  %v59 = vld [vmem:[%s1 + $0x80] sm:$0xf]
  %v60 = vld [vmem:[%s1 + $0x84] sm:$0xf]
  %v61 = vld [vmem:[%s1 + $0x88] sm:$0xf]
  %v62 = vld [vmem:[%s1 + $0x8c] sm:$0xf]
  %v63 = vld [vmem:[%s1 + $0x90] sm:$0xf]
  %v64 = vld [vmem:[%s1 + $0x94] sm:$0xf]
  %v65 = vld [vmem:[%s1 + $0x98] sm:$0xf]
  %v66 = vld [vmem:[%s1 + $0x9c] sm:$0xf]
  %v67 = vld [vmem:[%s1 + $0xa0] sm:$0xf]
  %v68 = vld [vmem:[%s1 + $0xa4] sm:$0xf]
  %v69 = vld [vmem:[%s1 + $0xa8] sm:$0xf]
  %v70 = vld [vmem:[%s1 + $0xac] sm:$0xf]
  %v71 = vld [vmem:[%s1 + $0xb0] sm:$0xf]
  %v72 = vld [vmem:[%s1 + $0xb4] sm:$0xf]
  %v73 = vld [vmem:[%s1 + $0xb8] sm:$0xf]
  %v74 = vld [vmem:[%s1 + $0xbc] sm:$0xf]
  %v75 = vld [vmem:[%s1 + $0xc0] sm:$0xf]
  %v76 = vld [vmem:[%s1 + $0xc4] sm:$0xf]
  %v77 = vld [vmem:[%s1 + $0xc8] sm:$0xf]
  %v78 = vld [vmem:[%s1 + $0xcc] sm:$0xf]
  %v79 = vld [vmem:[%s1 + $0xd0] sm:$0xf]
  %v80 = vld [vmem:[%s1 + $0xd4] sm:$0xf]
  %v81 = vld [vmem:[%s1 + $0xd8] sm:$0xf]
  %v82 = vld [vmem:[%s1 + $0xdc] sm:$0xf]
  %v83 = vld [vmem:[%s1 + $0xe0] sm:$0xf]
  %v84 = vld [vmem:[%s1 + $0xe4] sm:$0xf]
  %v85 = vld [vmem:[%s1 + $0xe8] sm:$0xf]
  %v86 = vld [vmem:[%s1 + $0xec] sm:$0xf]
  %v87 = vld [vmem:[%s1 + $0xf0] sm:$0xf]
  %v88 = vld [vmem:[%s1 + $0xf4] sm:$0xf]
  %v89 = vld [vmem:[%s1 + $0xf8] sm:$0xf]
  %v90 = vld [vmem:[%s1 + $0xfc] sm:$0xf]
  %v91 = vld [vmem:[%s1 + $0x100] sm:$0xf]
  %v92 = vld [vmem:[%s1 + $0x104] sm:$0xf]
  %v93 = vld [vmem:[%s1 + $0x108] sm:$0xf]
  %v94 = vld [vmem:[%s1 + $0x10c] sm:$0xf]
  %v95 = vld [vmem:[%s1 + $0x110] sm:$0xf]
  %v96 = vld [vmem:[%s1 + $0x114] sm:$0xf]
  %v97 = vld [vmem:[%s1 + $0x118] sm:$0xf]
  %v98 = vld [vmem:[%s1 + $0x11c] sm:$0xf]
  %v99 = vld [vmem:[%s1 + $0x120] sm:$0xf]
  %v100 = vld [vmem:[%s1 + $0x124] sm:$0xf]
  %v101 = vld [vmem:[%s1 + $0x128] sm:$0xf]
  %v102 = vld [vmem:[%s2] sm:$0x1]
  %v104 = vlaneseq
  %v105 = vshrl.u32 %v104, 7
  %v106 = vsub.s32 0, %v105
  %v107 = vrot.slane %v102, %v106
  %v121 = vunpack.c.l.b16 %v15
  %v122 = vunpack.c.h.b16 %v15
  %v123 = vunpack.c.l.b16 %v16
  %v124 = vunpack.c.h.b16 %v16
  %v125 = vunpack.c.l.b16 %v17
  %v126 = vunpack.c.l.b16 %v18
  %v127 = vunpack.c.h.b16 %v18
  %v128 = vunpack.c.l.b16 %v19
  %v129 = vunpack.c.h.b16 %v19
  %v130 = vunpack.c.l.b16 %v20
  %v131 = vunpack.c.l.b16 %v21
  %v132 = vunpack.c.h.b16 %v21
  %v133 = vunpack.c.l.b16 %v22
  %v134 = vunpack.c.h.b16 %v22
  %v135 = vunpack.c.l.b16 %v23
  %v136 = vunpack.c.l.b16 %v24
  %v137 = vunpack.c.h.b16 %v24
  %v138 = vunpack.c.l.b16 %v25
  %v139 = vunpack.c.h.b16 %v25
  %v140 = vunpack.c.l.b16 %v26
  %v141 = vpack.c.b16 %v126, %v121
  %v142 = vpack.c.b16 %v127, %v122
  %v143 = vpack.c.b16 %v128, %v123
  %v144 = vpack.c.b16 %v129, %v124
  %v145 = vpack.c.b16 %v130, %v125
  %v146 = vpack.c.b16 %v136, %v131
  %v147 = vpack.c.b16 %v137, %v132
  %v148 = vpack.c.b16 %v138, %v133
  %v149 = vpack.c.b16 %v139, %v134
  %v150 = vpack.c.b16 %v140, %v135
  %v234 = vunpack.c.l.b16 %v27
  %v235 = vunpack.c.l.b16 %v28
  %v236 = vunpack.c.l.b16 %v29
  %v237 = vunpack.c.l.b16 %v30
  %v238 = vunpack.c.l.b16 %v31
  %v239 = vunpack.c.l.b16 %v32
  %v240 = vunpack.c.l.b16 %v33
  %v241 = vunpack.c.l.b16 %v34
  %v242 = vunpack.c.l.b16 %v35
  %v243 = vunpack.c.l.b16 %v36
  %v244 = vunpack.c.l.b16 %v37
  %v245 = vunpack.c.l.b16 %v38
  %v246 = vunpack.c.l.b16 %v39
  %v247 = vunpack.c.l.b16 %v40
  %v248 = vunpack.c.l.b16 %v41
  %v249 = vunpack.c.l.b16 %v42
  %v250 = vunpack.c.l.b16 %v43
  %v251 = vunpack.c.l.b16 %v44
  %v252 = vunpack.c.l.b16 %v45
  %v253 = vunpack.c.l.b16 %v46
  %v254 = vunpack.c.l.b16 %v47
  %v255 = vunpack.c.l.b16 %v48
  %v256 = vunpack.c.l.b16 %v49
  %v257 = vunpack.c.l.b16 %v50
  %v258 = vunpack.c.l.b16 %v51
  %v259 = vunpack.c.l.b16 %v52
  %v260 = vunpack.c.l.b16 %v53
  %v261 = vunpack.c.l.b16 %v54
  %v262 = vunpack.c.l.b16 %v55
  %v263 = vunpack.c.l.b16 %v56
  %v264 = vunpack.c.l.b16 %v57
  %v265 = vunpack.c.l.b16 %v58
  %v266 = vunpack.c.l.b16 %v59
  %v267 = vunpack.c.l.b16 %v60
  %v268 = vunpack.c.l.b16 %v61
  %v269 = vunpack.c.l.b16 %v62
  %v270 = vunpack.c.l.b16 %v63
  %v271 = vunpack.c.l.b16 %v64
  %v272 = vunpack.c.l.b16 %v65
  %v273 = vunpack.c.l.b16 %v66
  %v274 = vunpack.c.l.b16 %v67
  %v275 = vunpack.c.l.b16 %v68
  %v276 = vunpack.c.l.b16 %v69
  %v277 = vunpack.c.l.b16 %v70
  %v278 = vunpack.c.l.b16 %v71
  %v279 = vunpack.c.l.b16 %v72
  %v280 = vunpack.c.l.b16 %v73
  %v281 = vunpack.c.l.b16 %v74
  %v282 = vunpack.c.l.b16 %v75
  %v283 = vunpack.c.l.b16 %v76
  %v284 = vunpack.c.l.b16 %v77
  %v285 = vunpack.c.l.b16 %v78
  %v286 = vunpack.c.l.b16 %v79
  %v287 = vunpack.c.l.b16 %v80
  %v288 = vunpack.c.l.b16 %v81
  %v289 = vunpack.c.l.b16 %v82
  %v290 = vunpack.c.l.b16 %v83
  %v291 = vunpack.c.l.b16 %v84
  %v292 = vunpack.c.l.b16 %v85
  %v293 = vunpack.c.l.b16 %v86
  %v294 = vunpack.c.l.b16 %v87
  %v295 = vunpack.c.l.b16 %v88
  %v296 = vunpack.c.l.b16 %v89
  %v297 = vunpack.c.l.b16 %v90
  %v298 = vunpack.c.l.b16 %v91
  %v299 = vunpack.c.l.b16 %v92
  %v300 = vunpack.c.l.b16 %v93
  %v301 = vunpack.c.l.b16 %v94
  %v302 = vunpack.c.l.b16 %v95
  %v303 = vunpack.c.l.b16 %v96
  %v304 = vunpack.c.l.b16 %v97
  %v305 = vunpack.c.l.b16 %v98
  %v306 = vunpack.c.l.b16 %v99
  %v307 = vunpack.c.l.b16 %v100
  %v308 = vunpack.c.l.b16 %v101
  %v309 = vpack.c.b16 %v235, %v234
  %v310 = vpack.c.b16 %v237, %v236
  %v311 = vpack.c.b16 %v239, %v238
  %v312 = vpack.c.b16 %v241, %v240
  %v313 = vpack.c.b16 %v243, %v242
  %v314 = vpack.c.b16 %v245, %v244
  %v315 = vpack.c.b16 %v247, %v246
  %v316 = vpack.c.b16 %v249, %v248
  %v317 = vpack.c.b16 %v251, %v250
  %v318 = vpack.c.b16 %v253, %v252
  %v319 = vpack.c.b16 %v255, %v254
  %v320 = vpack.c.b16 %v257, %v256
  %v321 = vpack.c.b16 %v259, %v258
  %v322 = vpack.c.b16 %v261, %v260
  %v323 = vpack.c.b16 %v263, %v262
  %v324 = vpack.c.b16 %v265, %v264
  %v325 = vpack.c.b16 %v267, %v266
  %v326 = vpack.c.b16 %v269, %v268
  %v327 = vpack.c.b16 %v271, %v270
  %v328 = vpack.c.b16 %v273, %v272
  %v329 = vpack.c.b16 %v275, %v274
  %v330 = vpack.c.b16 %v277, %v276
  %v331 = vpack.c.b16 %v279, %v278
  %v332 = vpack.c.b16 %v281, %v280
  %v333 = vpack.c.b16 %v283, %v282
  %v334 = vpack.c.b16 %v285, %v284
  %v335 = vpack.c.b16 %v287, %v286
  %v336 = vpack.c.b16 %v289, %v288
  %v337 = vpack.c.b16 %v291, %v290
  %v338 = vpack.c.b16 %v293, %v292
  %v339 = vpack.c.b16 %v295, %v294
  %v340 = vpack.c.b16 %v297, %v296
  %v341 = vpack.c.b16 %v299, %v298
  %v342 = vpack.c.b16 %v301, %v300
  %v343 = vpack.c.b16 %v303, %v302
  %v344 = vpack.c.b16 %v305, %v304
  %v345 = vpack.c.b16 %v307, %v306
  %v346 = vpack.c.b16 %v308, %v308
  %vm384 = vcmask 719872
  %v386 = vsel %vm384, %v145, 0
  %v389 = vsel %vm384, %v150, 0
  %vm391 = vcmask 1043456
  %v393 = vsel %vm391, %v346, 0
  %395 = vmatprep.subr.bf16.mxu0 0
  %396 = vmatpush1.bf16.msra.mxu0 %v309
  %397 = vmatprep.subr.bf16.mxu0 0
  %398 = vmatpush1.bf16.msra.mxu0 %v310
  %399 = vmatprep.subr.bf16.mxu0 0
  %400 = vmatpush1.bf16.msra.mxu0 %v311
  %401 = vmatprep.subr.bf16.mxu0 0
  %402 = vmatpush1.bf16.msra.mxu0 %v312
  %403 = vmatprep.subr.bf16.mxu0 0
  %404 = vmatpush1.bf16.msra.mxu0 %v313
  %405 = vmatprep.subr.bf16.mxu0 0
  %406 = vmatpush1.bf16.msra.mxu0 %v314
  %407 = vmatprep.subr.bf16.mxu0 0
  %408 = vmatpush1.bf16.msra.mxu0 %v315
  %409 = vmatprep.subr.bf16.mxu0 0
  %410 = vmatpush1.bf16.msra.mxu0 %v316
  %411 = vmatprep.subr.bf16.mxu0 0
  %412 = vmatpush1.bf16.msra.mxu0 %v317
  %413 = vmatprep.subr.bf16.mxu0 0
  %414 = vmatpush1.bf16.msra.mxu0 %v318
  %415 = vmatprep.subr.bf16.mxu0 0
  %416 = vmatpush1.bf16.msra.mxu0 %v319
  %417 = vmatprep.subr.bf16.mxu0 0
  %418 = vmatpush1.bf16.msra.mxu0 %v320
  %419 = vmatprep.subr.bf16.mxu0 0
  %420 = vmatpush1.bf16.msra.mxu0 %v321
  %421 = vmatprep.subr.bf16.mxu0 0
  %422 = vmatpush1.bf16.msra.mxu0 %v322
  %423 = vmatprep.subr.bf16.mxu0 0
  %424 = vmatpush1.bf16.msra.mxu0 %v323
  %425 = vmatprep.subr.bf16.mxu0 0
  %426 = vmatpush1.bf16.msra.mxu0 %v324
  %427 = vmatprep.mubr.bf16.mxu0 %v142
  %428 = vmatmul.mubr.bf16.gmra.mrb[0].mxu0 %v141
  %v429 = vpop.f32.mrb[0].mxu0
  %v430 = vadd.f32 %v107, %v429
  %v431 = vpop.f32.mrb[0].mxu0
  %v432 = vpop.f32.mrb[0].mxu0
  %v433 = vadd.f32 %v107, %v432
  %v434 = vpop.f32.mrb[0].mxu0
  %435 = vmatprep.mubr.bf16.mxu0 %v147
  %436 = vmatmul.mubr.bf16.gmra.mrb[0].mxu0 %v146
  %v437 = vpop.f32.mrb[0].mxu0
  %v438 = vadd.f32 %v107, %v437
  %v439 = vpop.f32.mrb[0].mxu0
  %v440 = vpop.f32.mrb[0].mxu0
  %v441 = vadd.f32 %v107, %v440
  %v442 = vpop.f32.mrb[0].mxu0
  %443 = vdwg.mxu0
  %444 = vmatprep.subr.bf16.mxu0 0
  %445 = vmatpush1.bf16.msra.mxu0 %v325
  %446 = vmatprep.subr.bf16.mxu0 0
  %447 = vmatpush1.bf16.msra.mxu0 %v326
  %448 = vmatprep.subr.bf16.mxu0 0
  %449 = vmatpush1.bf16.msra.mxu0 %v327
  %450 = vmatprep.subr.bf16.mxu0 0
  %451 = vmatpush1.bf16.msra.mxu0 %v328
  %452 = vmatprep.subr.bf16.mxu0 0
  %453 = vmatpush1.bf16.msra.mxu0 %v329
  %454 = vmatprep.subr.bf16.mxu0 0
  %455 = vmatpush1.bf16.msra.mxu0 %v330
  %456 = vmatprep.subr.bf16.mxu0 0
  %457 = vmatpush1.bf16.msra.mxu0 %v331
  %458 = vmatprep.subr.bf16.mxu0 0
  %459 = vmatpush1.bf16.msra.mxu0 %v332
  %460 = vmatprep.subr.bf16.mxu0 0
  %461 = vmatpush1.bf16.msra.mxu0 %v333
  %462 = vmatprep.subr.bf16.mxu0 0
  %463 = vmatpush1.bf16.msra.mxu0 %v334
  %464 = vmatprep.subr.bf16.mxu0 0
  %465 = vmatpush1.bf16.msra.mxu0 %v335
  %466 = vmatprep.subr.bf16.mxu0 0
  %467 = vmatpush1.bf16.msra.mxu0 %v336
  %468 = vmatprep.subr.bf16.mxu0 0
  %469 = vmatpush1.bf16.msra.mxu0 %v337
  %470 = vmatprep.subr.bf16.mxu0 0
  %471 = vmatpush1.bf16.msra.mxu0 %v338
  %472 = vmatprep.subr.bf16.mxu0 0
  %473 = vmatpush1.bf16.msra.mxu0 %v339
  %474 = vmatprep.subr.bf16.mxu0 0
  %475 = vmatpush1.bf16.msra.mxu0 %v340
  %476 = vmatprep.mubr.bf16.mxu0 %v144
  %477 = vmatmul.mubr.bf16.gmra.mrb[0].mxu0 %v143
  %v478 = vpop.f32.mrb[0].mxu0
  %v479 = vadd.f32 %v430, %v478
  %v480 = vpop.f32.mrb[0].mxu0
  %v481 = vpop.f32.mrb[0].mxu0
  %v482 = vadd.f32 %v433, %v481
  %v483 = vpop.f32.mrb[0].mxu0
  %484 = vmatprep.mubr.bf16.mxu0 %v149
  %485 = vmatmul.mubr.bf16.gmra.mrb[0].mxu0 %v148
  %v486 = vpop.f32.mrb[0].mxu0
  %v487 = vadd.f32 %v438, %v486
  %v488 = vpop.f32.mrb[0].mxu0
  %v489 = vpop.f32.mrb[0].mxu0
  %v490 = vadd.f32 %v441, %v489
  %v491 = vpop.f32.mrb[0].mxu0
  %492 = vdwg.mxu0
  %493 = vmatprep.subr.bf16.mxu0 0
  %494 = vmatpush1.bf16.msra.mxu0 %v341
  %495 = vmatprep.subr.bf16.mxu0 0
  %496 = vmatpush1.bf16.msra.mxu0 %v342
  %497 = vmatprep.subr.bf16.mxu0 0
  %498 = vmatpush1.bf16.msra.mxu0 %v343
  %499 = vmatprep.subr.bf16.mxu0 0
  %500 = vmatpush1.bf16.msra.mxu0 %v344
  %501 = vmatprep.subr.bf16.mxu0 0
  %502 = vmatpush1.bf16.msra.mxu0 %v345
  %503 = vmatprep.subr.bf16.mxu0 0
  %504 = vmatpush1.bf16.msra.mxu0 %v393
  %505 = vmatprep.subr.bf16.mxu0 0
  %506 = vmatpush1.bf16.msra.mxu0 0
  %507 = vmatprep.subr.bf16.mxu0 0
  %508 = vmatpush1.bf16.msra.mxu0 0
  %509 = vmatprep.subr.bf16.mxu0 0
  %510 = vmatpush1.bf16.msra.mxu0 0
  %511 = vmatprep.subr.bf16.mxu0 0
  %512 = vmatpush1.bf16.msra.mxu0 0
  %513 = vmatprep.subr.bf16.mxu0 0
  %514 = vmatpush1.bf16.msra.mxu0 0
  %515 = vmatprep.subr.bf16.mxu0 0
  %516 = vmatpush1.bf16.msra.mxu0 0
  %517 = vmatprep.subr.bf16.mxu0 0
  %518 = vmatpush1.bf16.msra.mxu0 0
  %519 = vmatprep.subr.bf16.mxu0 0
  %520 = vmatpush1.bf16.msra.mxu0 0
  %521 = vmatprep.subr.bf16.mxu0 0
  %522 = vmatpush1.bf16.msra.mxu0 0
  %523 = vmatprep.subr.bf16.mxu0 0
  %524 = vmatpush1.bf16.msra.mxu0 0
  %525 = vmatprep.mubr.bf16.mxu0 0
  %526 = vmatmul.mubr.bf16.gmra.mrb[0].mxu0 %v386
  %v527 = vpop.f32.mrb[0].mxu0
  %v528 = vadd.f32 %v479, %v527
  %v529 = vpop.f32.mrb[0].mxu0
  %v530 = vpop.f32.mrb[0].mxu0
  %v531 = vadd.f32 %v482, %v530
  %v532 = vpop.f32.mrb[0].mxu0
  %533 = vmatprep.mubr.bf16.mxu0 0
  %534 = vmatmul.mubr.bf16.gmra.mrb[0].mxu0 %v389
  %v535 = vpop.f32.mrb[0].mxu0
  %v536 = vadd.f32 %v487, %v535
  %v537 = vpop.f32.mrb[0].mxu0
  %v538 = vpop.f32.mrb[0].mxu0
  %v539 = vadd.f32 %v490, %v538
  %v540 = vpop.f32.mrb[0].mxu0
  %541 = vdwg.mxu0
  %v542 = vmax.f32 %v528, 0.0
  %v543 = vmax.f32 %v531, 0.0
  %v544 = vmax.f32 %v536, 0.0
  %v545 = vmax.f32 %v539, 0.0
  %v546 = vpack.c.bf16 %v543, %v542
  %v547 = vpack.c.bf16 %v545, %v544
  %v550 = vunpack.c.l.b16 %v546
  %v551 = vunpack.c.h.b16 %v546
  %v552 = vunpack.c.l.b16 %v547
  %v553 = vunpack.c.h.b16 %v547
  %v554 = vpack.c.b16 %v550, %v550
  %v555 = vpack.c.b16 %v551, %v551
  %v556 = vpack.c.b16 %v552, %v552
  %v557 = vpack.c.b16 %v553, %v553
  %562 = vst [vmem:[%s3] sm:$0xf] %v554
  %563 = vst [vmem:[%s3 + $0x4] sm:$0xf] %v555
  %564 = vst [vmem:[%s3 + $0x8] sm:$0xf] %v556
  %565 = vst [vmem:[%s3 + $0xc] sm:$0xf] %v557
  // Predicated region
  $region14: #{motion_compensation.12} parent=0 // pred_check
    _
  $region15: #{motion_compensation.12} parent=0 // pred_check_branch
    %567 = sbr.rel (0) target = $region17
  $region16: #{motion_compensation.12} parent=0 // pred_region
    _
  $region17: #{motion_compensation.12} parent=0 // pred_fallthru
    _
  // Predicated region
  $region18: #{motion_compensation.12} parent=0 // pred_check
    _
  $region19: #{motion_compensation.12} parent=0 // pred_check_branch
    %569 = sbr.rel (0) target = $region21
  $region20: #{motion_compensation.12} parent=0 // pred_region
    _
  $region21: #{motion_compensation.12} parent=0 // pred_fallthru
    _

// kernel: motion_compensation.13
$region0: #{motion_compensation.13}
  #allocation0 [shape = 'u32[]', space=smem, size = 0x4, offset = 0x4, fixed_abs, tag = 'smem constant byte address 0x4 - core index']
  #allocation1 [shape = 'u32[144,128]{1,0:T(1,128)}', space=vmem, size = 0x12000, scoped, tag = 'internal scratch']
  %s0 = inlined_call_operand.vmem [shape: bf16[32,216], index: 0, kind: input, shape index: {}]
  %s1 = inlined_call_operand.vmem [shape: bf16[216,128], index: 1, kind: input, shape index: {}]
  %s2 = inlined_call_operand.vmem [shape: f32[1,128], index: 2, kind: input, shape index: {}]
  %s3 = inlined_call_operand.vmem [shape: bf16[32,128], index: 3, kind: output, shape index: {}]
  %s4 = sld [smem:[#allocation0]]
  $region22: #{motion_compensation.13} parent=0
    _
  %s6 = ssub.s32 1, %s4
  %s7 = scalar_select 0, %s6, %s4
  // Predicated region
  $region2: #{motion_compensation.13} parent=0 // pred_check
    _
  $region3: #{motion_compensation.13} parent=0 // pred_check_branch
    %9 = sbr.rel (0) target = $region5
  $region4: #{motion_compensation.13} parent=0 // pred_region
    _
  $region5: #{motion_compensation.13} parent=0 // pred_fallthru
    _
  // Predicated region
  $region6: #{motion_compensation.13} parent=0 // pred_check
    _
  $region7: #{motion_compensation.13} parent=0 // pred_check_branch
    %11 = sbr.rel (0) target = $region9
  $region8: #{motion_compensation.13} parent=0 // pred_region
    _
  $region9: #{motion_compensation.13} parent=0 // pred_fallthru
    _
  // Predicated region
  $region10: #{motion_compensation.13} parent=0 // pred_check
    _
  $region11: #{motion_compensation.13} parent=0 // pred_check_branch
    %13 = sbr.rel (0) target = $region13
  $region12: #{motion_compensation.13} parent=0 // pred_region
    _
  $region13: #{motion_compensation.13} parent=0 // pred_fallthru
    _
  %v15 = vld [vmem:[%s0] sm:$0xff]
  %v16 = vld [vmem:[%s0 + $0x8] sm:$0xff]
  %v17 = vld [vmem:[%s0 + $0x10] sm:$0xff]
  %v18 = vld [vmem:[%s0 + $0x18] sm:$0xff]
  %v19 = vld [vmem:[%s1] sm:$0xf]
  %v20 = vld [vmem:[%s1 + $0x4] sm:$0xf]
  %v21 = vld [vmem:[%s1 + $0x8] sm:$0xf]
  %v22 = vld [vmem:[%s1 + $0xc] sm:$0xf]
  %v23 = vld [vmem:[%s1 + $0x10] sm:$0xf]
  %v24 = vld [vmem:[%s1 + $0x14] sm:$0xf]
  %v25 = vld [vmem:[%s1 + $0x18] sm:$0xf]
  %v26 = vld [vmem:[%s1 + $0x1c] sm:$0xf]
  %v27 = vld [vmem:[%s1 + $0x20] sm:$0xf]
  %v28 = vld [vmem:[%s1 + $0x24] sm:$0xf]
  %v29 = vld [vmem:[%s1 + $0x28] sm:$0xf]
  %v30 = vld [vmem:[%s1 + $0x2c] sm:$0xf]
  %v31 = vld [vmem:[%s1 + $0x30] sm:$0xf]
  %v32 = vld [vmem:[%s1 + $0x34] sm:$0xf]
  %v33 = vld [vmem:[%s1 + $0x38] sm:$0xf]
  %v34 = vld [vmem:[%s1 + $0x3c] sm:$0xf]
  %v35 = vld [vmem:[%s1 + $0x40] sm:$0xf]
  %v36 = vld [vmem:[%s1 + $0x44] sm:$0xf]
  %v37 = vld [vmem:[%s1 + $0x48] sm:$0xf]
  %v38 = vld [vmem:[%s1 + $0x4c] sm:$0xf]
  %v39 = vld [vmem:[%s1 + $0x50] sm:$0xf]
  %v40 = vld [vmem:[%s1 + $0x54] sm:$0xf]
  %v41 = vld [vmem:[%s1 + $0x58] sm:$0xf]
  %v42 = vld [vmem:[%s1 + $0x5c] sm:$0xf]
  %v43 = vld [vmem:[%s1 + $0x60] sm:$0xf]
  %v44 = vld [vmem:[%s1 + $0x64] sm:$0xf]
  %v45 = vld [vmem:[%s1 + $0x68] sm:$0xf]
  %v46 = vld [vmem:[%s2] sm:$0x1]
  %v48 = vlaneseq
  %v49 = vshrl.u32 %v48, 7
  %v50 = vsub.s32 0, %v49
  %v51 = vrot.slane %v46, %v50
  %v57 = vunpack.c.l.b16 %v15
  %v58 = vunpack.c.h.b16 %v15
  %v59 = vunpack.c.l.b16 %v16
  %v60 = vunpack.c.h.b16 %v16
  %v61 = vunpack.c.l.b16 %v17
  %v62 = vunpack.c.h.b16 %v17
  %v63 = vunpack.c.l.b16 %v18
  %v64 = vunpack.c.h.b16 %v18
  %v65 = vpack.c.b16 %v59, %v57
  %v66 = vpack.c.b16 %v60, %v58
  %v67 = vpack.c.b16 %v63, %v61
  %v68 = vpack.c.b16 %v64, %v62
  %v98 = vunpack.c.l.b16 %v19
  %v99 = vunpack.c.l.b16 %v20
  %v100 = vunpack.c.l.b16 %v21
  %v101 = vunpack.c.l.b16 %v22
  %v102 = vunpack.c.l.b16 %v23
  %v103 = vunpack.c.l.b16 %v24
  %v104 = vunpack.c.l.b16 %v25
  %v105 = vunpack.c.l.b16 %v26
  %v106 = vunpack.c.l.b16 %v27
  %v107 = vunpack.c.l.b16 %v28
  %v108 = vunpack.c.l.b16 %v29
  %v109 = vunpack.c.l.b16 %v30
  %v110 = vunpack.c.l.b16 %v31
  %v111 = vunpack.c.l.b16 %v32
  %v112 = vunpack.c.l.b16 %v33
  %v113 = vunpack.c.l.b16 %v34
  %v114 = vunpack.c.l.b16 %v35
  %v115 = vunpack.c.l.b16 %v36
  %v116 = vunpack.c.l.b16 %v37
  %v117 = vunpack.c.l.b16 %v38
  %v118 = vunpack.c.l.b16 %v39
  %v119 = vunpack.c.l.b16 %v40
  %v120 = vunpack.c.l.b16 %v41
  %v121 = vunpack.c.l.b16 %v42
  %v122 = vunpack.c.l.b16 %v43
  %v123 = vunpack.c.l.b16 %v44
  %v124 = vunpack.c.l.b16 %v45
  %v125 = vpack.c.b16 %v99, %v98
  %v126 = vpack.c.b16 %v101, %v100
  %v127 = vpack.c.b16 %v103, %v102
  %v128 = vpack.c.b16 %v105, %v104
  %v129 = vpack.c.b16 %v107, %v106
  %v130 = vpack.c.b16 %v109, %v108
  %v131 = vpack.c.b16 %v111, %v110
  %v132 = vpack.c.b16 %v113, %v112
  %v133 = vpack.c.b16 %v115, %v114
  %v134 = vpack.c.b16 %v117, %v116
  %v135 = vpack.c.b16 %v119, %v118
  %v136 = vpack.c.b16 %v121, %v120
  %v137 = vpack.c.b16 %v123, %v122
  %v138 = vpack.c.b16 %v124, %v124
  %vm152 = vcmask 719872
  %v154 = vsel %vm152, %v66, 0
  %v157 = vsel %vm152, %v68, 0
  %vm159 = vcmask 1043456
  %v161 = vsel %vm159, %v138, 0
  %163 = vmatprep.subr.bf16.mxu0 0
  %164 = vmatpush1.bf16.msra.mxu0 %v125
  %165 = vmatprep.subr.bf16.mxu0 0
  %166 = vmatpush1.bf16.msra.mxu0 %v126
  %167 = vmatprep.subr.bf16.mxu0 0
  %168 = vmatpush1.bf16.msra.mxu0 %v127
  %169 = vmatprep.subr.bf16.mxu0 0
  %170 = vmatpush1.bf16.msra.mxu0 %v128
  %171 = vmatprep.subr.bf16.mxu0 0
  %172 = vmatpush1.bf16.msra.mxu0 %v129
  %173 = vmatprep.subr.bf16.mxu0 0
  %174 = vmatpush1.bf16.msra.mxu0 %v130
  %175 = vmatprep.subr.bf16.mxu0 0
  %176 = vmatpush1.bf16.msra.mxu0 %v131
  %177 = vmatprep.subr.bf16.mxu0 0
  %178 = vmatpush1.bf16.msra.mxu0 %v132
  %179 = vmatprep.subr.bf16.mxu0 0
  %180 = vmatpush1.bf16.msra.mxu0 %v133
  %181 = vmatprep.subr.bf16.mxu0 0
  %182 = vmatpush1.bf16.msra.mxu0 %v134
  %183 = vmatprep.subr.bf16.mxu0 0
  %184 = vmatpush1.bf16.msra.mxu0 %v135
  %185 = vmatprep.subr.bf16.mxu0 0
  %186 = vmatpush1.bf16.msra.mxu0 %v136
  %187 = vmatprep.subr.bf16.mxu0 0
  %188 = vmatpush1.bf16.msra.mxu0 %v137
  %189 = vmatprep.subr.bf16.mxu0 0
  %190 = vmatpush1.bf16.msra.mxu0 %v161
  %191 = vmatprep.subr.bf16.mxu0 0
  %192 = vmatpush1.bf16.msra.mxu0 0
  %193 = vmatprep.subr.bf16.mxu0 0
  %194 = vmatpush1.bf16.msra.mxu0 0
  %195 = vmatprep.mubr.bf16.mxu0 %v154
  %196 = vmatmul.mubr.bf16.gmra.mrb[0].mxu0 %v65
  %v197 = vpop.f32.mrb[0].mxu0
  %v198 = vadd.f32 %v51, %v197
  %v199 = vpop.f32.mrb[0].mxu0
  %v200 = vpop.f32.mrb[0].mxu0
  %v201 = vadd.f32 %v51, %v200
  %v202 = vpop.f32.mrb[0].mxu0
  %203 = vmatprep.mubr.bf16.mxu0 %v157
  %204 = vmatmul.mubr.bf16.gmra.mrb[0].mxu0 %v67
  %v205 = vpop.f32.mrb[0].mxu0
  %v206 = vadd.f32 %v51, %v205
  %v207 = vpop.f32.mrb[0].mxu0
  %v208 = vpop.f32.mrb[0].mxu0
  %v209 = vadd.f32 %v51, %v208
  %v210 = vpop.f32.mrb[0].mxu0
  %211 = vdwg.mxu0
  %v212 = vmax.f32 %v198, 0.0
  %v213 = vmax.f32 %v201, 0.0
  %v214 = vmax.f32 %v206, 0.0
  %v215 = vmax.f32 %v209, 0.0
  %v216 = vpack.c.bf16 %v213, %v212
  %v217 = vpack.c.bf16 %v215, %v214
  %v220 = vunpack.c.l.b16 %v216
  %v221 = vunpack.c.h.b16 %v216
  %v222 = vunpack.c.l.b16 %v217
  %v223 = vunpack.c.h.b16 %v217
  %v224 = vpack.c.b16 %v220, %v220
  %v225 = vpack.c.b16 %v221, %v221
  %v226 = vpack.c.b16 %v222, %v222
  %v227 = vpack.c.b16 %v223, %v223
  %232 = vst [vmem:[%s3] sm:$0xf] %v224
  %233 = vst [vmem:[%s3 + $0x4] sm:$0xf] %v225
  %234 = vst [vmem:[%s3 + $0x8] sm:$0xf] %v226
  %235 = vst [vmem:[%s3 + $0xc] sm:$0xf] %v227
  // Predicated region
  $region14: #{motion_compensation.13} parent=0 // pred_check
    _
  $region15: #{motion_compensation.13} parent=0 // pred_check_branch
    %237 = sbr.rel (0) target = $region17
  $region16: #{motion_compensation.13} parent=0 // pred_region
    _
  $region17: #{motion_compensation.13} parent=0 // pred_fallthru
    _
  // Predicated region
  $region18: #{motion_compensation.13} parent=0 // pred_check
    _
  $region19: #{motion_compensation.13} parent=0 // pred_check_branch
    %239 = sbr.rel (0) target = $region21
  $region20: #{motion_compensation.13} parent=0 // pred_region
    _
  $region21: #{motion_compensation.13} parent=0 // pred_fallthru
    _

// kernel: motion_compensation.14
$region0: #{motion_compensation.14}
  #allocation0 [shape = 'u32[]', space=smem, size = 0x4, offset = 0x4, fixed_abs, tag = 'smem constant byte address 0x4 - core index']
  #allocation1 [shape = 'u32[144,128]{1,0:T(1,128)}', space=vmem, size = 0x12000, scoped, tag = 'internal scratch']
  %s0 = inlined_call_operand.vmem [shape: bf16[32,216], index: 0, kind: input, shape index: {}]
  %s1 = inlined_call_operand.vmem [shape: bf16[216,128], index: 1, kind: input, shape index: {}]
  %s2 = inlined_call_operand.vmem [shape: f32[1,128], index: 2, kind: input, shape index: {}]
  %s3 = inlined_call_operand.vmem [shape: f32[32,128], index: 3, kind: output, shape index: {}]
  %s4 = sld [smem:[#allocation0]]
  $region22: #{motion_compensation.14} parent=0
    _
  %s6 = ssub.s32 1, %s4
  %s7 = scalar_select 0, %s6, %s4
  // Predicated region
  $region2: #{motion_compensation.14} parent=0 // pred_check
    _
  $region3: #{motion_compensation.14} parent=0 // pred_check_branch
    %9 = sbr.rel (0) target = $region5
  $region4: #{motion_compensation.14} parent=0 // pred_region
    _
  $region5: #{motion_compensation.14} parent=0 // pred_fallthru
    _
  // Predicated region
  $region6: #{motion_compensation.14} parent=0 // pred_check
    _
  $region7: #{motion_compensation.14} parent=0 // pred_check_branch
    %11 = sbr.rel (0) target = $region9
  $region8: #{motion_compensation.14} parent=0 // pred_region
    _
  $region9: #{motion_compensation.14} parent=0 // pred_fallthru
    _
  // Predicated region
  $region10: #{motion_compensation.14} parent=0 // pred_check
    _
  $region11: #{motion_compensation.14} parent=0 // pred_check_branch
    %13 = sbr.rel (0) target = $region13
  $region12: #{motion_compensation.14} parent=0 // pred_region
    _
  $region13: #{motion_compensation.14} parent=0 // pred_fallthru
    _
  %v15 = vld [vmem:[%s0] sm:$0xff]
  %v16 = vld [vmem:[%s0 + $0x8] sm:$0xff]
  %v17 = vld [vmem:[%s0 + $0x10] sm:$0xff]
  %v18 = vld [vmem:[%s0 + $0x18] sm:$0xff]
  %v19 = vld [vmem:[%s1] sm:$0xf]
  %v20 = vld [vmem:[%s1 + $0x4] sm:$0xf]
  %v21 = vld [vmem:[%s1 + $0x8] sm:$0xf]
  %v22 = vld [vmem:[%s1 + $0xc] sm:$0xf]
  %v23 = vld [vmem:[%s1 + $0x10] sm:$0xf]
  %v24 = vld [vmem:[%s1 + $0x14] sm:$0xf]
  %v25 = vld [vmem:[%s1 + $0x18] sm:$0xf]
  %v26 = vld [vmem:[%s1 + $0x1c] sm:$0xf]
  %v27 = vld [vmem:[%s1 + $0x20] sm:$0xf]
  %v28 = vld [vmem:[%s1 + $0x24] sm:$0xf]
  %v29 = vld [vmem:[%s1 + $0x28] sm:$0xf]
  %v30 = vld [vmem:[%s1 + $0x2c] sm:$0xf]
  %v31 = vld [vmem:[%s1 + $0x30] sm:$0xf]
  %v32 = vld [vmem:[%s1 + $0x34] sm:$0xf]
  %v33 = vld [vmem:[%s1 + $0x38] sm:$0xf]
  %v34 = vld [vmem:[%s1 + $0x3c] sm:$0xf]
  %v35 = vld [vmem:[%s1 + $0x40] sm:$0xf]
  %v36 = vld [vmem:[%s1 + $0x44] sm:$0xf]
  %v37 = vld [vmem:[%s1 + $0x48] sm:$0xf]
  %v38 = vld [vmem:[%s1 + $0x4c] sm:$0xf]
  %v39 = vld [vmem:[%s1 + $0x50] sm:$0xf]
  %v40 = vld [vmem:[%s1 + $0x54] sm:$0xf]
  %v41 = vld [vmem:[%s1 + $0x58] sm:$0xf]
  %v42 = vld [vmem:[%s1 + $0x5c] sm:$0xf]
  %v43 = vld [vmem:[%s1 + $0x60] sm:$0xf]
  %v44 = vld [vmem:[%s1 + $0x64] sm:$0xf]
  %v45 = vld [vmem:[%s1 + $0x68] sm:$0xf]
  %v46 = vld [vmem:[%s2] sm:$0x1]
  %v48 = vlaneseq
  %v49 = vshrl.u32 %v48, 7
  %v50 = vsub.s32 0, %v49
  %v51 = vrot.slane %v46, %v50
  %v57 = vunpack.c.l.b16 %v15
  %v58 = vunpack.c.h.b16 %v15
  %v59 = vunpack.c.l.b16 %v16
  %v60 = vunpack.c.h.b16 %v16
  %v61 = vunpack.c.l.b16 %v17
  %v62 = vunpack.c.h.b16 %v17
  %v63 = vunpack.c.l.b16 %v18
  %v64 = vunpack.c.h.b16 %v18
  %v65 = vpack.c.b16 %v59, %v57
  %v66 = vpack.c.b16 %v60, %v58
  %v67 = vpack.c.b16 %v63, %v61
  %v68 = vpack.c.b16 %v64, %v62
  %v98 = vunpack.c.l.b16 %v19
  %v99 = vunpack.c.l.b16 %v20
  %v100 = vunpack.c.l.b16 %v21
  %v101 = vunpack.c.l.b16 %v22
  %v102 = vunpack.c.l.b16 %v23
  %v103 = vunpack.c.l.b16 %v24
  %v104 = vunpack.c.l.b16 %v25
  %v105 = vunpack.c.l.b16 %v26
  %v106 = vunpack.c.l.b16 %v27
  %v107 = vunpack.c.l.b16 %v28
  %v108 = vunpack.c.l.b16 %v29
  %v109 = vunpack.c.l.b16 %v30
  %v110 = vunpack.c.l.b16 %v31
  %v111 = vunpack.c.l.b16 %v32
  %v112 = vunpack.c.l.b16 %v33
  %v113 = vunpack.c.l.b16 %v34
  %v114 = vunpack.c.l.b16 %v35
  %v115 = vunpack.c.l.b16 %v36
  %v116 = vunpack.c.l.b16 %v37
  %v117 = vunpack.c.l.b16 %v38
  %v118 = vunpack.c.l.b16 %v39
  %v119 = vunpack.c.l.b16 %v40
  %v120 = vunpack.c.l.b16 %v41
  %v121 = vunpack.c.l.b16 %v42
  %v122 = vunpack.c.l.b16 %v43
  %v123 = vunpack.c.l.b16 %v44
  %v124 = vunpack.c.l.b16 %v45
  %v125 = vpack.c.b16 %v99, %v98
  %v126 = vpack.c.b16 %v101, %v100
  %v127 = vpack.c.b16 %v103, %v102
  %v128 = vpack.c.b16 %v105, %v104
  %v129 = vpack.c.b16 %v107, %v106
  %v130 = vpack.c.b16 %v109, %v108
  %v131 = vpack.c.b16 %v111, %v110
  %v132 = vpack.c.b16 %v113, %v112
  %v133 = vpack.c.b16 %v115, %v114
  %v134 = vpack.c.b16 %v117, %v116
  %v135 = vpack.c.b16 %v119, %v118
  %v136 = vpack.c.b16 %v121, %v120
  %v137 = vpack.c.b16 %v123, %v122
  %v138 = vpack.c.b16 %v124, %v124
  %vm152 = vcmask 719872
  %v154 = vsel %vm152, %v66, 0
  %v157 = vsel %vm152, %v68, 0
  %vm159 = vcmask 1043456
  %v161 = vsel %vm159, %v138, 0
  %163 = vmatprep.subr.bf16.mxu0 0
  %164 = vmatpush1.bf16.msra.mxu0 %v125
  %165 = vmatprep.subr.bf16.mxu0 0
  %166 = vmatpush1.bf16.msra.mxu0 %v126
  %167 = vmatprep.subr.bf16.mxu0 0
  %168 = vmatpush1.bf16.msra.mxu0 %v127
  %169 = vmatprep.subr.bf16.mxu0 0
  %170 = vmatpush1.bf16.msra.mxu0 %v128
  %171 = vmatprep.subr.bf16.mxu0 0
  %172 = vmatpush1.bf16.msra.mxu0 %v129
  %173 = vmatprep.subr.bf16.mxu0 0
  %174 = vmatpush1.bf16.msra.mxu0 %v130
  %175 = vmatprep.subr.bf16.mxu0 0
  %176 = vmatpush1.bf16.msra.mxu0 %v131
  %177 = vmatprep.subr.bf16.mxu0 0
  %178 = vmatpush1.bf16.msra.mxu0 %v132
  %179 = vmatprep.subr.bf16.mxu0 0
  %180 = vmatpush1.bf16.msra.mxu0 %v133
  %181 = vmatprep.subr.bf16.mxu0 0
  %182 = vmatpush1.bf16.msra.mxu0 %v134
  %183 = vmatprep.subr.bf16.mxu0 0
  %184 = vmatpush1.bf16.msra.mxu0 %v135
  %185 = vmatprep.subr.bf16.mxu0 0
  %186 = vmatpush1.bf16.msra.mxu0 %v136
  %187 = vmatprep.subr.bf16.mxu0 0
  %188 = vmatpush1.bf16.msra.mxu0 %v137
  %189 = vmatprep.subr.bf16.mxu0 0
  %190 = vmatpush1.bf16.msra.mxu0 %v161
  %191 = vmatprep.subr.bf16.mxu0 0
  %192 = vmatpush1.bf16.msra.mxu0 0
  %193 = vmatprep.subr.bf16.mxu0 0
  %194 = vmatpush1.bf16.msra.mxu0 0
  %195 = vmatprep.mubr.bf16.mxu0 %v154
  %196 = vmatmul.mubr.bf16.gmra.mrb[0].mxu0 %v65
  %v197 = vpop.f32.mrb[0].mxu0
  %v198 = vadd.f32 %v51, %v197
  %v199 = vpop.f32.mrb[0].mxu0
  %v200 = vpop.f32.mrb[0].mxu0
  %v201 = vadd.f32 %v51, %v200
  %v202 = vpop.f32.mrb[0].mxu0
  %203 = vmatprep.mubr.bf16.mxu0 %v157
  %204 = vmatmul.mubr.bf16.gmra.mrb[0].mxu0 %v67
  %v205 = vpop.f32.mrb[0].mxu0
  %v206 = vadd.f32 %v51, %v205
  %v207 = vpop.f32.mrb[0].mxu0
  %v208 = vpop.f32.mrb[0].mxu0
  %v209 = vadd.f32 %v51, %v208
  %v210 = vpop.f32.mrb[0].mxu0
  %211 = vdwg.mxu0
  %v212 = vtanh.pop %v198
  %v213 = vtanh.pop %v201
  %v214 = vtanh.pop %v206
  %v215 = vtanh.pop %v209
  %216 = vst [vmem:[%s3] sm:$0xff] %v212
  %217 = vst [vmem:[%s3 + $0x8] sm:$0xff] %v213
  %218 = vst [vmem:[%s3 + $0x10] sm:$0xff] %v214
  %219 = vst [vmem:[%s3 + $0x18] sm:$0xff] %v215
  // Predicated region
  $region14: #{motion_compensation.14} parent=0 // pred_check
    _
  $region15: #{motion_compensation.14} parent=0 // pred_check_branch
    %221 = sbr.rel (0) target = $region17
  $region16: #{motion_compensation.14} parent=0 // pred_region
    _
  $region17: #{motion_compensation.14} parent=0 // pred_fallthru
    _
  // Predicated region
  $region18: #{motion_compensation.14} parent=0 // pred_check
    _
  $region19: #{motion_compensation.14} parent=0 // pred_check_branch
    %223 = sbr.rel (0) target = $region21
  $region20: #{motion_compensation.14} parent=0 // pred_region
    _
  $region21: #{motion_compensation.14} parent=0 // pred_fallthru
    _

// kernel: motion_compensation.19
$region0: #{motion_compensation.19}
  #allocation0 [shape = 'u32[]', space=smem, size = 0x4, offset = 0x4, fixed_abs, tag = 'smem constant byte address 0x4 - core index']
  #allocation1 [shape = 'u32[144,128]{1,0:T(1,128)}', space=vmem, size = 0x12000, scoped, tag = 'internal scratch']
  %s0 = inlined_call_operand.vmem [shape: bf16[128,216], index: 0, kind: input, shape index: {}]
  %s1 = inlined_call_operand.vmem [shape: bf16[216,128], index: 1, kind: input, shape index: {}]
  %s2 = inlined_call_operand.vmem [shape: f32[1,128], index: 2, kind: input, shape index: {}]
  %s3 = inlined_call_operand.vmem [shape: f32[128,128], index: 3, kind: output, shape index: {}]
  %s4 = sld [smem:[#allocation0]]
  $region22: #{motion_compensation.19} parent=0
    _
  %s6 = ssub.s32 1, %s4
  %s7 = scalar_select 0, %s6, %s4
  // Predicated region
  $region2: #{motion_compensation.19} parent=0 // pred_check
    _
  $region3: #{motion_compensation.19} parent=0 // pred_check_branch
    %9 = sbr.rel (0) target = $region5
  $region4: #{motion_compensation.19} parent=0 // pred_region
    _
  $region5: #{motion_compensation.19} parent=0 // pred_fallthru
    _
  // Predicated region
  $region6: #{motion_compensation.19} parent=0 // pred_check
    _
  $region7: #{motion_compensation.19} parent=0 // pred_check_branch
    %11 = sbr.rel (0) target = $region9
  $region8: #{motion_compensation.19} parent=0 // pred_region
    _
  $region9: #{motion_compensation.19} parent=0 // pred_fallthru
    _
  // Predicated region
  $region10: #{motion_compensation.19} parent=0 // pred_check
    _
  $region11: #{motion_compensation.19} parent=0 // pred_check_branch
    %13 = sbr.rel (0) target = $region13
  $region12: #{motion_compensation.19} parent=0 // pred_region
    _
  $region13: #{motion_compensation.19} parent=0 // pred_fallthru
    _
  %v15 = vld [vmem:[%s0] sm:$0xff]
  %v16 = vld [vmem:[%s0 + $0x8] sm:$0xff]
  %v17 = vld [vmem:[%s0 + $0x10] sm:$0xff]
  %v18 = vld [vmem:[%s0 + $0x18] sm:$0xff]
  %v19 = vld [vmem:[%s0 + $0x20] sm:$0xff]
  %v20 = vld [vmem:[%s0 + $0x28] sm:$0xff]
  %v21 = vld [vmem:[%s0 + $0x30] sm:$0xff]
  %v22 = vld [vmem:[%s0 + $0x38] sm:$0xff]
  %v23 = vld [vmem:[%s0 + $0x40] sm:$0xff]
  %v24 = vld [vmem:[%s0 + $0x48] sm:$0xff]
  %v25 = vld [vmem:[%s0 + $0x50] sm:$0xff]
  %v26 = vld [vmem:[%s0 + $0x58] sm:$0xff]
  %v27 = vld [vmem:[%s0 + $0x60] sm:$0xff]
  %v28 = vld [vmem:[%s0 + $0x68] sm:$0xff]
  %v29 = vld [vmem:[%s0 + $0x70] sm:$0xff]
  %v30 = vld [vmem:[%s0 + $0x78] sm:$0xff]
  %v31 = vld [vmem:[%s1] sm:$0xf]
  %v32 = vld [vmem:[%s1 + $0x4] sm:$0xf]
  %v33 = vld [vmem:[%s1 + $0x8] sm:$0xf]
  %v34 = vld [vmem:[%s1 + $0xc] sm:$0xf]
  %v35 = vld [vmem:[%s1 + $0x10] sm:$0xf]
  %v36 = vld [vmem:[%s1 + $0x14] sm:$0xf]
  %v37 = vld [vmem:[%s1 + $0x18] sm:$0xf]
  %v38 = vld [vmem:[%s1 + $0x1c] sm:$0xf]
  %v39 = vld [vmem:[%s1 + $0x20] sm:$0xf]
  %v40 = vld [vmem:[%s1 + $0x24] sm:$0xf]
  %v41 = vld [vmem:[%s1 + $0x28] sm:$0xf]
  %v42 = vld [vmem:[%s1 + $0x2c] sm:$0xf]
  %v43 = vld [vmem:[%s1 + $0x30] sm:$0xf]
  %v44 = vld [vmem:[%s1 + $0x34] sm:$0xf]
  %v45 = vld [vmem:[%s1 + $0x38] sm:$0xf]
  %v46 = vld [vmem:[%s1 + $0x3c] sm:$0xf]
  %v47 = vld [vmem:[%s1 + $0x40] sm:$0xf]
  %v48 = vld [vmem:[%s1 + $0x44] sm:$0xf]
  %v49 = vld [vmem:[%s1 + $0x48] sm:$0xf]
  %v50 = vld [vmem:[%s1 + $0x4c] sm:$0xf]
  %v51 = vld [vmem:[%s1 + $0x50] sm:$0xf]
  %v52 = vld [vmem:[%s1 + $0x54] sm:$0xf]
  %v53 = vld [vmem:[%s1 + $0x58] sm:$0xf]
  %v54 = vld [vmem:[%s1 + $0x5c] sm:$0xf]
  %v55 = vld [vmem:[%s1 + $0x60] sm:$0xf]
  %v56 = vld [vmem:[%s1 + $0x64] sm:$0xf]
  %v57 = vld [vmem:[%s1 + $0x68] sm:$0xf]
  %v58 = vld [vmem:[%s2] sm:$0x1]
  %v60 = vlaneseq
  %v61 = vshrl.u32 %v60, 7
  %v62 = vsub.s32 0, %v61
  %v63 = vrot.slane %v58, %v62
  %v81 = vunpack.c.l.b16 %v15
  %v82 = vunpack.c.h.b16 %v15
  %v83 = vunpack.c.l.b16 %v16
  %v84 = vunpack.c.h.b16 %v16
  %v85 = vunpack.c.l.b16 %v17
  %v86 = vunpack.c.h.b16 %v17
  %v87 = vunpack.c.l.b16 %v18
  %v88 = vunpack.c.h.b16 %v18
  %v89 = vunpack.c.l.b16 %v19
  %v90 = vunpack.c.h.b16 %v19
  %v91 = vunpack.c.l.b16 %v20
  %v92 = vunpack.c.h.b16 %v20
  %v93 = vunpack.c.l.b16 %v21
  %v94 = vunpack.c.h.b16 %v21
  %v95 = vunpack.c.l.b16 %v22
  %v96 = vunpack.c.h.b16 %v22
  %v97 = vunpack.c.l.b16 %v23
  %v98 = vunpack.c.h.b16 %v23
  %v99 = vunpack.c.l.b16 %v24
  %v100 = vunpack.c.h.b16 %v24
  %v101 = vunpack.c.l.b16 %v25
  %v102 = vunpack.c.h.b16 %v25
  %v103 = vunpack.c.l.b16 %v26
  %v104 = vunpack.c.h.b16 %v26
  %v105 = vunpack.c.l.b16 %v27
  %v106 = vunpack.c.h.b16 %v27
  %v107 = vunpack.c.l.b16 %v28
  %v108 = vunpack.c.h.b16 %v28
  %v109 = vunpack.c.l.b16 %v29
  %v110 = vunpack.c.h.b16 %v29
  %v111 = vunpack.c.l.b16 %v30
  %v112 = vunpack.c.h.b16 %v30
  %v113 = vpack.c.b16 %v83, %v81
  %v114 = vpack.c.b16 %v84, %v82
  %v115 = vpack.c.b16 %v87, %v85
  %v116 = vpack.c.b16 %v88, %v86
  %v117 = vpack.c.b16 %v91, %v89
  %v118 = vpack.c.b16 %v92, %v90
  %v119 = vpack.c.b16 %v95, %v93
  %v120 = vpack.c.b16 %v96, %v94
  %v121 = vpack.c.b16 %v99, %v97
  %v122 = vpack.c.b16 %v100, %v98
  %v123 = vpack.c.b16 %v103, %v101
  %v124 = vpack.c.b16 %v104, %v102
  %v125 = vpack.c.b16 %v107, %v105
  %v126 = vpack.c.b16 %v108, %v106
  %v127 = vpack.c.b16 %v111, %v109
  %v128 = vpack.c.b16 %v112, %v110
  %v164 = vunpack.c.l.b16 %v31
  %v165 = vunpack.c.l.b16 %v32
  %v166 = vunpack.c.l.b16 %v33
  %v167 = vunpack.c.l.b16 %v34
  %v168 = vunpack.c.l.b16 %v35
  %v169 = vunpack.c.l.b16 %v36
  %v170 = vunpack.c.l.b16 %v37
  %v171 = vunpack.c.l.b16 %v38
  %v172 = vunpack.c.l.b16 %v39
  %v173 = vunpack.c.l.b16 %v40
  %v174 = vunpack.c.l.b16 %v41
  %v175 = vunpack.c.l.b16 %v42
  %v176 = vunpack.c.l.b16 %v43
  %v177 = vunpack.c.l.b16 %v44
  %v178 = vunpack.c.l.b16 %v45
  %v179 = vunpack.c.l.b16 %v46
  %v180 = vunpack.c.l.b16 %v47
  %v181 = vunpack.c.l.b16 %v48
  %v182 = vunpack.c.l.b16 %v49
  %v183 = vunpack.c.l.b16 %v50
  %v184 = vunpack.c.l.b16 %v51
  %v185 = vunpack.c.l.b16 %v52
  %v186 = vunpack.c.l.b16 %v53
  %v187 = vunpack.c.l.b16 %v54
  %v188 = vunpack.c.l.b16 %v55
  %v189 = vunpack.c.l.b16 %v56
  %v190 = vunpack.c.l.b16 %v57
  %v191 = vpack.c.b16 %v165, %v164
  %v192 = vpack.c.b16 %v167, %v166
  %v193 = vpack.c.b16 %v169, %v168
  %v194 = vpack.c.b16 %v171, %v170
  %v195 = vpack.c.b16 %v173, %v172
  %v196 = vpack.c.b16 %v175, %v174
  %v197 = vpack.c.b16 %v177, %v176
  %v198 = vpack.c.b16 %v179, %v178
  %v199 = vpack.c.b16 %v181, %v180
  %v200 = vpack.c.b16 %v183, %v182
  %v201 = vpack.c.b16 %v185, %v184
  %v202 = vpack.c.b16 %v187, %v186
  %v203 = vpack.c.b16 %v189, %v188
  %v204 = vpack.c.b16 %v190, %v190
  %vm218 = vcmask 719872
  %v220 = vsel %vm218, %v114, 0
  %v223 = vsel %vm218, %v116, 0
  %v226 = vsel %vm218, %v118, 0
  %v229 = vsel %vm218, %v120, 0
  %v232 = vsel %vm218, %v122, 0
  %v235 = vsel %vm218, %v124, 0
  %v238 = vsel %vm218, %v126, 0
  %v241 = vsel %vm218, %v128, 0
  %vm243 = vcmask 1043456
  %v245 = vsel %vm243, %v204, 0
  %247 = vmatprep.subr.bf16.mxu0 0
  %248 = vmatpush1.bf16.msra.mxu0 %v191
  %249 = vmatprep.subr.bf16.mxu0 0
  %250 = vmatpush1.bf16.msra.mxu0 %v192
  %251 = vmatprep.subr.bf16.mxu0 0
  %252 = vmatpush1.bf16.msra.mxu0 %v193
  %253 = vmatprep.subr.bf16.mxu0 0
  %254 = vmatpush1.bf16.msra.mxu0 %v194
  %255 = vmatprep.subr.bf16.mxu0 0
  %256 = vmatpush1.bf16.msra.mxu0 %v195
  %257 = vmatprep.subr.bf16.mxu0 0
  %258 = vmatpush1.bf16.msra.mxu0 %v196
  %259 = vmatprep.subr.bf16.mxu0 0
  %260 = vmatpush1.bf16.msra.mxu0 %v197
  %261 = vmatprep.subr.bf16.mxu0 0
  %262 = vmatpush1.bf16.msra.mxu0 %v198
  %263 = vmatprep.subr.bf16.mxu0 0
  %264 = vmatpush1.bf16.msra.mxu0 %v199
  %265 = vmatprep.subr.bf16.mxu0 0
  %266 = vmatpush1.bf16.msra.mxu0 %v200
  %267 = vmatprep.subr.bf16.mxu0 0
  %268 = vmatpush1.bf16.msra.mxu0 %v201
  %269 = vmatprep.subr.bf16.mxu0 0
  %270 = vmatpush1.bf16.msra.mxu0 %v202
  %271 = vmatprep.subr.bf16.mxu0 0
  %272 = vmatpush1.bf16.msra.mxu0 %v203
  %273 = vmatprep.subr.bf16.mxu0 0
  %274 = vmatpush1.bf16.msra.mxu0 %v245
  %275 = vmatprep.subr.bf16.mxu0 0
  %276 = vmatpush1.bf16.msra.mxu0 0
  %277 = vmatprep.subr.bf16.mxu0 0
  %278 = vmatpush1.bf16.msra.mxu0 0
  %279 = vmatprep.mubr.bf16.mxu0 %v220
  %280 = vmatmul.mubr.bf16.gmra.mrb[0].mxu0 %v113
  %v281 = vpop.f32.mrb[0].mxu0
  %v282 = vadd.f32 %v63, %v281
  %v283 = vpop.f32.mrb[0].mxu0
  %v284 = vpop.f32.mrb[0].mxu0
  %v285 = vadd.f32 %v63, %v284
  %v286 = vpop.f32.mrb[0].mxu0
  %287 = vmatprep.mubr.bf16.mxu0 %v223
  %288 = vmatmul.mubr.bf16.gmra.mrb[0].mxu0 %v115
  %v289 = vpop.f32.mrb[0].mxu0
  %v290 = vadd.f32 %v63, %v289
  %v291 = vpop.f32.mrb[0].mxu0
  %v292 = vpop.f32.mrb[0].mxu0
  %v293 = vadd.f32 %v63, %v292
  %v294 = vpop.f32.mrb[0].mxu0
  %295 = vmatprep.mubr.bf16.mxu0 %v226
  %296 = vmatmul.mubr.bf16.gmra.mrb[0].mxu0 %v117
  %v297 = vpop.f32.mrb[0].mxu0
  %v298 = vadd.f32 %v63, %v297
  %v299 = vpop.f32.mrb[0].mxu0
  %v300 = vpop.f32.mrb[0].mxu0
  %v301 = vadd.f32 %v63, %v300
  %v302 = vpop.f32.mrb[0].mxu0
  %303 = vmatprep.mubr.bf16.mxu0 %v229
  %304 = vmatmul.mubr.bf16.gmra.mrb[0].mxu0 %v119
  %v305 = vpop.f32.mrb[0].mxu0
  %v306 = vadd.f32 %v63, %v305
  %v307 = vpop.f32.mrb[0].mxu0
  %v308 = vpop.f32.mrb[0].mxu0
  %v309 = vadd.f32 %v63, %v308
  %v310 = vpop.f32.mrb[0].mxu0
  %311 = vmatprep.mubr.bf16.mxu0 %v232
  %312 = vmatmul.mubr.bf16.gmra.mrb[0].mxu0 %v121
  %v313 = vpop.f32.mrb[0].mxu0
  %v314 = vadd.f32 %v63, %v313
  %v315 = vpop.f32.mrb[0].mxu0
  %v316 = vpop.f32.mrb[0].mxu0
  %v317 = vadd.f32 %v63, %v316
  %v318 = vpop.f32.mrb[0].mxu0
  %319 = vmatprep.mubr.bf16.mxu0 %v235
  %320 = vmatmul.mubr.bf16.gmra.mrb[0].mxu0 %v123
  %v321 = vpop.f32.mrb[0].mxu0
  %v322 = vadd.f32 %v63, %v321
  %v323 = vpop.f32.mrb[0].mxu0
  %v324 = vpop.f32.mrb[0].mxu0
  %v325 = vadd.f32 %v63, %v324
  %v326 = vpop.f32.mrb[0].mxu0
  %327 = vmatprep.mubr.bf16.mxu0 %v238
  %328 = vmatmul.mubr.bf16.gmra.mrb[0].mxu0 %v125
  %v329 = vpop.f32.mrb[0].mxu0
  %v330 = vadd.f32 %v63, %v329
  %v331 = vpop.f32.mrb[0].mxu0
  %v332 = vpop.f32.mrb[0].mxu0
  %v333 = vadd.f32 %v63, %v332
  %v334 = vpop.f32.mrb[0].mxu0
  %335 = vmatprep.mubr.bf16.mxu0 %v241
  %336 = vmatmul.mubr.bf16.gmra.mrb[0].mxu0 %v127
  %v337 = vpop.f32.mrb[0].mxu0
  %v338 = vadd.f32 %v63, %v337
  %v339 = vpop.f32.mrb[0].mxu0
  %v340 = vpop.f32.mrb[0].mxu0
  %v341 = vadd.f32 %v63, %v340
  %v342 = vpop.f32.mrb[0].mxu0
  %343 = vdwg.mxu0
  %v344 = vtanh.pop %v282
  %v345 = vtanh.pop %v285
  %v346 = vtanh.pop %v290
  %v347 = vtanh.pop %v293
  %v348 = vtanh.pop %v298
  %v349 = vtanh.pop %v301
  %v350 = vtanh.pop %v306
  %v351 = vtanh.pop %v309
  %v352 = vtanh.pop %v314
  %v353 = vtanh.pop %v317
  %v354 = vtanh.pop %v322
  %v355 = vtanh.pop %v325
  %v356 = vtanh.pop %v330
  %v357 = vtanh.pop %v333
  %v358 = vtanh.pop %v338
  %v359 = vtanh.pop %v341
  %360 = vst [vmem:[%s3] sm:$0xff] %v344
  %361 = vst [vmem:[%s3 + $0x8] sm:$0xff] %v345
  %362 = vst [vmem:[%s3 + $0x10] sm:$0xff] %v346
  %363 = vst [vmem:[%s3 + $0x18] sm:$0xff] %v347
  %364 = vst [vmem:[%s3 + $0x20] sm:$0xff] %v348
  %365 = vst [vmem:[%s3 + $0x28] sm:$0xff] %v349
  %366 = vst [vmem:[%s3 + $0x30] sm:$0xff] %v350
  %367 = vst [vmem:[%s3 + $0x38] sm:$0xff] %v351
  %368 = vst [vmem:[%s3 + $0x40] sm:$0xff] %v352
  %369 = vst [vmem:[%s3 + $0x48] sm:$0xff] %v353
  %370 = vst [vmem:[%s3 + $0x50] sm:$0xff] %v354
  %371 = vst [vmem:[%s3 + $0x58] sm:$0xff] %v355
  %372 = vst [vmem:[%s3 + $0x60] sm:$0xff] %v356
  %373 = vst [vmem:[%s3 + $0x68] sm:$0xff] %v357
  %374 = vst [vmem:[%s3 + $0x70] sm:$0xff] %v358
  %375 = vst [vmem:[%s3 + $0x78] sm:$0xff] %v359
  // Predicated region
  $region14: #{motion_compensation.19} parent=0 // pred_check
    _
  $region15: #{motion_compensation.19} parent=0 // pred_check_branch
    %377 = sbr.rel (0) target = $region17
  $region16: #{motion_compensation.19} parent=0 // pred_region
    _
  $region17: #{motion_compensation.19} parent=0 // pred_fallthru
    _
  // Predicated region
  $region18: #{motion_compensation.19} parent=0 // pred_check
    _
  $region19: #{motion_compensation.19} parent=0 // pred_check_branch
    %379 = sbr.rel (0) target = $region21
  $region20: #{motion_compensation.19} parent=0 // pred_region
    _
  $region21: #{motion_compensation.19} parent=0 // pred_fallthru
    _

// kernel: motion_compensation.15
$region0: #{motion_compensation.15}
  #allocation0 [shape = 'u32[]', space=smem, size = 0x4, offset = 0x4, fixed_abs, tag = 'smem constant byte address 0x4 - core index']
  #allocation1 [shape = 'u32[144,128]{1,0:T(1,128)}', space=vmem, size = 0x12000, scoped, tag = 'internal scratch']
  %s0 = inlined_call_operand.vmem [shape: bf16[128,400], index: 0, kind: input, shape index: {}]
  %s1 = inlined_call_operand.vmem [shape: bf16[400,128], index: 1, kind: input, shape index: {}]
  %s2 = inlined_call_operand.vmem [shape: f32[1,128], index: 2, kind: input, shape index: {}]
  %s3 = inlined_call_operand.vmem [shape: bf16[128,128], index: 3, kind: output, shape index: {}]
  %s4 = sld [smem:[#allocation0]]
  $region22: #{motion_compensation.15} parent=0
    _
  %s6 = ssub.s32 1, %s4
  %s7 = scalar_select 0, %s6, %s4
  // Predicated region
  $region2: #{motion_compensation.15} parent=0 // pred_check
    _
  $region3: #{motion_compensation.15} parent=0 // pred_check_branch
    %9 = sbr.rel (0) target = $region5
  $region4: #{motion_compensation.15} parent=0 // pred_region
    _
  $region5: #{motion_compensation.15} parent=0 // pred_fallthru
    _
  // Predicated region
  $region6: #{motion_compensation.15} parent=0 // pred_check
    _
  $region7: #{motion_compensation.15} parent=0 // pred_check_branch
    %11 = sbr.rel (0) target = $region9
  $region8: #{motion_compensation.15} parent=0 // pred_region
    _
  $region9: #{motion_compensation.15} parent=0 // pred_fallthru
    _
  // Predicated region
  $region10: #{motion_compensation.15} parent=0 // pred_check
    _
  $region11: #{motion_compensation.15} parent=0 // pred_check_branch
    %13 = sbr.rel (0) target = $region13
  $region12: #{motion_compensation.15} parent=0 // pred_region
    _
  $region13: #{motion_compensation.15} parent=0 // pred_fallthru
    _
  %v15 = vld [vmem:[%s0] sm:$0xff]
  %v16 = vld [vmem:[%s0 + $0x8] sm:$0xff]
  %v17 = vld [vmem:[%s0 + $0x10] sm:$0xff]
  %v18 = vld [vmem:[%s0 + $0x18] sm:$0xff]
  %v19 = vld [vmem:[%s0 + $0x20] sm:$0xff]
  %v20 = vld [vmem:[%s0 + $0x28] sm:$0xff]
  %v21 = vld [vmem:[%s0 + $0x30] sm:$0xff]
  %v22 = vld [vmem:[%s0 + $0x38] sm:$0xff]
  %v23 = vld [vmem:[%s0 + $0x40] sm:$0xff]
  %v24 = vld [vmem:[%s0 + $0x48] sm:$0xff]
  %v25 = vld [vmem:[%s0 + $0x50] sm:$0xff]
  %v26 = vld [vmem:[%s0 + $0x58] sm:$0xff]
  %v27 = vld [vmem:[%s0 + $0x60] sm:$0xff]
  %v28 = vld [vmem:[%s0 + $0x68] sm:$0xff]
  %v29 = vld [vmem:[%s0 + $0x70] sm:$0xff]
  %v30 = vld [vmem:[%s0 + $0x78] sm:$0xff]
  %v31 = vld [vmem:[%s0 + $0x80] sm:$0xff]
  %v32 = vld [vmem:[%s0 + $0x88] sm:$0xff]
  %v33 = vld [vmem:[%s0 + $0x90] sm:$0xff]
  %v34 = vld [vmem:[%s0 + $0x98] sm:$0xff]
  %v35 = vld [vmem:[%s0 + $0xa0] sm:$0xff]
  %v36 = vld [vmem:[%s0 + $0xa8] sm:$0xff]
  %v37 = vld [vmem:[%s0 + $0xb0] sm:$0xff]
  %v38 = vld [vmem:[%s0 + $0xb8] sm:$0xff]
  %v39 = vld [vmem:[%s0 + $0xc0] sm:$0xff]
  %v40 = vld [vmem:[%s0 + $0xc8] sm:$0xff]
  %v41 = vld [vmem:[%s0 + $0xd0] sm:$0xff]
  %v42 = vld [vmem:[%s0 + $0xd8] sm:$0xff]
  %v43 = vld [vmem:[%s0 + $0xe0] sm:$0xff]
  %v44 = vld [vmem:[%s0 + $0xe8] sm:$0xff]
  %v45 = vld [vmem:[%s0 + $0xf0] sm:$0xff]
  %v46 = vld [vmem:[%s0 + $0xf8] sm:$0xff]
  %v47 = vld [vmem:[%s1] sm:$0xf]
  %v48 = vld [vmem:[%s1 + $0x4] sm:$0xf]
  %v49 = vld [vmem:[%s1 + $0x8] sm:$0xf]
  %v50 = vld [vmem:[%s1 + $0xc] sm:$0xf]
  %v51 = vld [vmem:[%s1 + $0x10] sm:$0xf]
  %v52 = vld [vmem:[%s1 + $0x14] sm:$0xf]
  %v53 = vld [vmem:[%s1 + $0x18] sm:$0xf]
  %v54 = vld [vmem:[%s1 + $0x1c] sm:$0xf]
  %v55 = vld [vmem:[%s1 + $0x20] sm:$0xf]
  %v56 = vld [vmem:[%s1 + $0x24] sm:$0xf]
  %v57 = vld [vmem:[%s1 + $0x28] sm:$0xf]
  %v58 = vld [vmem:[%s1 + $0x2c] sm:$0xf]
  %v59 = vld [vmem:[%s1 + $0x30] sm:$0xf]
  %v60 = vld [vmem:[%s1 + $0x34] sm:$0xf]
  %v61 = vld [vmem:[%s1 + $0x38] sm:$0xf]
  %v62 = vld [vmem:[%s1 + $0x3c] sm:$0xf]
  %v63 = vld [vmem:[%s1 + $0x40] sm:$0xf]
  %v64 = vld [vmem:[%s1 + $0x44] sm:$0xf]
  %v65 = vld [vmem:[%s1 + $0x48] sm:$0xf]
  %v66 = vld [vmem:[%s1 + $0x4c] sm:$0xf]
  %v67 = vld [vmem:[%s1 + $0x50] sm:$0xf]
  %v68 = vld [vmem:[%s1 + $0x54] sm:$0xf]
  %v69 = vld [vmem:[%s1 + $0x58] sm:$0xf]
  %v70 = vld [vmem:[%s1 + $0x5c] sm:$0xf]
  %v71 = vld [vmem:[%s1 + $0x60] sm:$0xf]
  %v72 = vld [vmem:[%s1 + $0x64] sm:$0xf]
  %v73 = vld [vmem:[%s1 + $0x68] sm:$0xf]
  %v74 = vld [vmem:[%s1 + $0x6c] sm:$0xf]
  %v75 = vld [vmem:[%s1 + $0x70] sm:$0xf]
  %v76 = vld [vmem:[%s1 + $0x74] sm:$0xf]
  %v77 = vld [vmem:[%s1 + $0x78] sm:$0xf]
  %v78 = vld [vmem:[%s1 + $0x7c] sm:$0xf]
  %v79 = vld [vmem:[%s1 + $0x80] sm:$0xf]
  %v80 = vld [vmem:[%s1 + $0x84] sm:$0xf]
  %v81 = vld [vmem:[%s1 + $0x88] sm:$0xf]
  %v82 = vld [vmem:[%s1 + $0x8c] sm:$0xf]
  %v83 = vld [vmem:[%s1 + $0x90] sm:$0xf]
  %v84 = vld [vmem:[%s1 + $0x94] sm:$0xf]
  %v85 = vld [vmem:[%s1 + $0x98] sm:$0xf]
  %v86 = vld [vmem:[%s1 + $0x9c] sm:$0xf]
  %v87 = vld [vmem:[%s1 + $0xa0] sm:$0xf]
  %v88 = vld [vmem:[%s1 + $0xa4] sm:$0xf]
  %v89 = vld [vmem:[%s1 + $0xa8] sm:$0xf]
  %v90 = vld [vmem:[%s1 + $0xac] sm:$0xf]
  %v91 = vld [vmem:[%s1 + $0xb0] sm:$0xf]
  %v92 = vld [vmem:[%s1 + $0xb4] sm:$0xf]
  %v93 = vld [vmem:[%s1 + $0xb8] sm:$0xf]
  %v94 = vld [vmem:[%s1 + $0xbc] sm:$0xf]
  %v95 = vld [vmem:[%s1 + $0xc0] sm:$0xf]
  %v96 = vld [vmem:[%s1 + $0xc4] sm:$0xf]
  %v97 = vld [vmem:[%s2] sm:$0x1]
  %v99 = vlaneseq
  %v100 = vshrl.u32 %v99, 7
  %v101 = vsub.s32 0, %v100
  %v102 = vrot.slane %v97, %v101
  %v136 = vunpack.c.l.b16 %v15
  %v137 = vunpack.c.h.b16 %v15
  %v138 = vunpack.c.l.b16 %v16
  %v139 = vunpack.c.h.b16 %v16
  %v140 = vunpack.c.l.b16 %v17
  %v141 = vunpack.c.h.b16 %v17
  %v142 = vunpack.c.l.b16 %v18
  %v143 = vunpack.c.h.b16 %v18
  %v144 = vunpack.c.l.b16 %v19
  %v145 = vunpack.c.h.b16 %v19
  %v146 = vunpack.c.l.b16 %v20
  %v147 = vunpack.c.h.b16 %v20
  %v148 = vunpack.c.l.b16 %v21
  %v149 = vunpack.c.h.b16 %v21
  %v150 = vunpack.c.l.b16 %v22
  %v151 = vunpack.c.h.b16 %v22
  %v152 = vunpack.c.l.b16 %v23
  %v153 = vunpack.c.h.b16 %v23
  %v154 = vunpack.c.l.b16 %v24
  %v155 = vunpack.c.h.b16 %v24
  %v156 = vunpack.c.l.b16 %v25
  %v157 = vunpack.c.h.b16 %v25
  %v158 = vunpack.c.l.b16 %v26
  %v159 = vunpack.c.h.b16 %v26
  %v160 = vunpack.c.l.b16 %v27
  %v161 = vunpack.c.h.b16 %v27
  %v162 = vunpack.c.l.b16 %v28
  %v163 = vunpack.c.h.b16 %v28
  %v164 = vunpack.c.l.b16 %v29
  %v165 = vunpack.c.h.b16 %v29
  %v166 = vunpack.c.l.b16 %v30
  %v167 = vunpack.c.h.b16 %v30
  %v168 = vunpack.c.l.b16 %v31
  %v169 = vunpack.c.h.b16 %v31
  %v170 = vunpack.c.l.b16 %v32
  %v171 = vunpack.c.h.b16 %v32
  %v172 = vunpack.c.l.b16 %v33
  %v173 = vunpack.c.h.b16 %v33
  %v174 = vunpack.c.l.b16 %v34
  %v175 = vunpack.c.h.b16 %v34
  %v176 = vunpack.c.l.b16 %v35
  %v177 = vunpack.c.h.b16 %v35
  %v178 = vunpack.c.l.b16 %v36
  %v179 = vunpack.c.h.b16 %v36
  %v180 = vunpack.c.l.b16 %v37
  %v181 = vunpack.c.h.b16 %v37
  %v182 = vunpack.c.l.b16 %v38
  %v183 = vunpack.c.h.b16 %v38
  %v184 = vunpack.c.l.b16 %v39
  %v185 = vunpack.c.h.b16 %v39
  %v186 = vunpack.c.l.b16 %v40
  %v187 = vunpack.c.h.b16 %v40
  %v188 = vunpack.c.l.b16 %v41
  %v189 = vunpack.c.h.b16 %v41
  %v190 = vunpack.c.l.b16 %v42
  %v191 = vunpack.c.h.b16 %v42
  %v192 = vunpack.c.l.b16 %v43
  %v193 = vunpack.c.h.b16 %v43
  %v194 = vunpack.c.l.b16 %v44
  %v195 = vunpack.c.h.b16 %v44
  %v196 = vunpack.c.l.b16 %v45
  %v197 = vunpack.c.h.b16 %v45
  %v198 = vunpack.c.l.b16 %v46
  %v199 = vunpack.c.h.b16 %v46
  %v200 = vpack.c.b16 %v140, %v136
  %v201 = vpack.c.b16 %v141, %v137
  %v202 = vpack.c.b16 %v142, %v138
  %v203 = vpack.c.b16 %v143, %v139
  %v204 = vpack.c.b16 %v148, %v144
  %v205 = vpack.c.b16 %v149, %v145
  %v206 = vpack.c.b16 %v150, %v146
  %v207 = vpack.c.b16 %v151, %v147
  %v208 = vpack.c.b16 %v156, %v152
  %v209 = vpack.c.b16 %v157, %v153
  %v210 = vpack.c.b16 %v158, %v154
  %v211 = vpack.c.b16 %v159, %v155
  %v212 = vpack.c.b16 %v164, %v160
  %v213 = vpack.c.b16 %v165, %v161
  %v214 = vpack.c.b16 %v166, %v162
  %v215 = vpack.c.b16 %v167, %v163
  %v216 = vpack.c.b16 %v172, %v168
  %v217 = vpack.c.b16 %v173, %v169
  %v218 = vpack.c.b16 %v174, %v170
  %v219 = vpack.c.b16 %v175, %v171
  %v220 = vpack.c.b16 %v180, %v176
  %v221 = vpack.c.b16 %v181, %v177
  %v222 = vpack.c.b16 %v182, %v178
  %v223 = vpack.c.b16 %v183, %v179
  %v224 = vpack.c.b16 %v188, %v184
  %v225 = vpack.c.b16 %v189, %v185
  %v226 = vpack.c.b16 %v190, %v186
  %v227 = vpack.c.b16 %v191, %v187
  %v228 = vpack.c.b16 %v196, %v192
  %v229 = vpack.c.b16 %v197, %v193
  %v230 = vpack.c.b16 %v198, %v194
  %v231 = vpack.c.b16 %v199, %v195
  %v306 = vunpack.c.l.b16 %v47
  %v307 = vunpack.c.l.b16 %v48
  %v308 = vunpack.c.l.b16 %v49
  %v309 = vunpack.c.l.b16 %v50
  %v310 = vunpack.c.l.b16 %v51
  %v311 = vunpack.c.l.b16 %v52
  %v312 = vunpack.c.l.b16 %v53
  %v313 = vunpack.c.l.b16 %v54
  %v314 = vunpack.c.l.b16 %v55
  %v315 = vunpack.c.l.b16 %v56
  %v316 = vunpack.c.l.b16 %v57
  %v317 = vunpack.c.l.b16 %v58
  %v318 = vunpack.c.l.b16 %v59
  %v319 = vunpack.c.l.b16 %v60
  %v320 = vunpack.c.l.b16 %v61
  %v321 = vunpack.c.l.b16 %v62
  %v322 = vunpack.c.l.b16 %v63
  %v323 = vunpack.c.l.b16 %v64
  %v324 = vunpack.c.l.b16 %v65
  %v325 = vunpack.c.l.b16 %v66
  %v326 = vunpack.c.l.b16 %v67
  %v327 = vunpack.c.l.b16 %v68
  %v328 = vunpack.c.l.b16 %v69
  %v329 = vunpack.c.l.b16 %v70
  %v330 = vunpack.c.l.b16 %v71
  %v331 = vunpack.c.l.b16 %v72
  %v332 = vunpack.c.l.b16 %v73
  %v333 = vunpack.c.l.b16 %v74
  %v334 = vunpack.c.l.b16 %v75
  %v335 = vunpack.c.l.b16 %v76
  %v336 = vunpack.c.l.b16 %v77
  %v337 = vunpack.c.l.b16 %v78
  %v338 = vunpack.c.l.b16 %v79
  %v339 = vunpack.c.l.b16 %v80
  %v340 = vunpack.c.l.b16 %v81
  %v341 = vunpack.c.l.b16 %v82
  %v342 = vunpack.c.l.b16 %v83
  %v343 = vunpack.c.l.b16 %v84
  %v344 = vunpack.c.l.b16 %v85
  %v345 = vunpack.c.l.b16 %v86
  %v346 = vunpack.c.l.b16 %v87
  %v347 = vunpack.c.l.b16 %v88
  %v348 = vunpack.c.l.b16 %v89
  %v349 = vunpack.c.l.b16 %v90
  %v350 = vunpack.c.l.b16 %v91
  %v351 = vunpack.c.l.b16 %v92
  %v352 = vunpack.c.l.b16 %v93
  %v353 = vunpack.c.l.b16 %v94
  %v354 = vunpack.c.l.b16 %v95
  %v355 = vunpack.c.l.b16 %v96
  %v356 = vpack.c.b16 %v307, %v306
  %v357 = vpack.c.b16 %v309, %v308
  %v358 = vpack.c.b16 %v311, %v310
  %v359 = vpack.c.b16 %v313, %v312
  %v360 = vpack.c.b16 %v315, %v314
  %v361 = vpack.c.b16 %v317, %v316
  %v362 = vpack.c.b16 %v319, %v318
  %v363 = vpack.c.b16 %v321, %v320
  %v364 = vpack.c.b16 %v323, %v322
  %v365 = vpack.c.b16 %v325, %v324
  %v366 = vpack.c.b16 %v327, %v326
  %v367 = vpack.c.b16 %v329, %v328
  %v368 = vpack.c.b16 %v331, %v330
  %v369 = vpack.c.b16 %v333, %v332
  %v370 = vpack.c.b16 %v335, %v334
  %v371 = vpack.c.b16 %v337, %v336
  %v372 = vpack.c.b16 %v339, %v338
  %v373 = vpack.c.b16 %v341, %v340
  %v374 = vpack.c.b16 %v343, %v342
  %v375 = vpack.c.b16 %v345, %v344
  %v376 = vpack.c.b16 %v347, %v346
  %v377 = vpack.c.b16 %v349, %v348
  %v378 = vpack.c.b16 %v351, %v350
  %v379 = vpack.c.b16 %v353, %v352
  %v380 = vpack.c.b16 %v355, %v354
  %vm406 = vcmask 130048
  %v408 = vsel %vm406, %v203, 0
  %v411 = vsel %vm406, %v207, 0
  %v414 = vsel %vm406, %v211, 0
  %v417 = vsel %vm406, %v215, 0
  %v420 = vsel %vm406, %v219, 0
  %v423 = vsel %vm406, %v223, 0
  %v426 = vsel %vm406, %v227, 0
  %v429 = vsel %vm406, %v231, 0
  %431 = vmatprep.subr.bf16.mxu0 0
  %432 = vmatpush1.bf16.msra.mxu0 %v356
  %433 = vmatprep.subr.bf16.mxu0 0
  %434 = vmatpush1.bf16.msra.mxu0 %v357
  %435 = vmatprep.subr.bf16.mxu0 0
  %436 = vmatpush1.bf16.msra.mxu0 %v358
  %437 = vmatprep.subr.bf16.mxu0 0
  %438 = vmatpush1.bf16.msra.mxu0 %v359
  %439 = vmatprep.subr.bf16.mxu0 0
  %440 = vmatpush1.bf16.msra.mxu0 %v360
  %441 = vmatprep.subr.bf16.mxu0 0
  %442 = vmatpush1.bf16.msra.mxu0 %v361
  %443 = vmatprep.subr.bf16.mxu0 0
  %444 = vmatpush1.bf16.msra.mxu0 %v362
  %445 = vmatprep.subr.bf16.mxu0 0
  %446 = vmatpush1.bf16.msra.mxu0 %v363
  %447 = vmatprep.subr.bf16.mxu0 0
  %448 = vmatpush1.bf16.msra.mxu0 %v364
  %449 = vmatprep.subr.bf16.mxu0 0
  %450 = vmatpush1.bf16.msra.mxu0 %v365
  %451 = vmatprep.subr.bf16.mxu0 0
  %452 = vmatpush1.bf16.msra.mxu0 %v366
  %453 = vmatprep.subr.bf16.mxu0 0
  %454 = vmatpush1.bf16.msra.mxu0 %v367
  %455 = vmatprep.subr.bf16.mxu0 0
  %456 = vmatpush1.bf16.msra.mxu0 %v368
  %457 = vmatprep.subr.bf16.mxu0 0
  %458 = vmatpush1.bf16.msra.mxu0 %v369
  %459 = vmatprep.subr.bf16.mxu0 0
  %460 = vmatpush1.bf16.msra.mxu0 %v370
  %461 = vmatprep.subr.bf16.mxu0 0
  %462 = vmatpush1.bf16.msra.mxu0 %v371
  %463 = vmatprep.mubr.bf16.mxu0 %v201
  %464 = vmatmul.mubr.bf16.gmra.mrb[0].mxu0 %v200
  %v465 = vpop.f32.mrb[0].mxu0
  %v466 = vadd.f32 %v102, %v465
  %v467 = vpop.f32.mrb[0].mxu0
  %v468 = vpop.f32.mrb[0].mxu0
  %v469 = vadd.f32 %v102, %v468
  %v470 = vpop.f32.mrb[0].mxu0
  %471 = vmatprep.mubr.bf16.mxu0 %v205
  %472 = vmatmul.mubr.bf16.gmra.mrb[0].mxu0 %v204
  %v473 = vpop.f32.mrb[0].mxu0
  %v474 = vadd.f32 %v102, %v473
  %v475 = vpop.f32.mrb[0].mxu0
  %v476 = vpop.f32.mrb[0].mxu0
  %v477 = vadd.f32 %v102, %v476
  %v478 = vpop.f32.mrb[0].mxu0
  %479 = vmatprep.mubr.bf16.mxu0 %v209
  %480 = vmatmul.mubr.bf16.gmra.mrb[0].mxu0 %v208
  %v481 = vpop.f32.mrb[0].mxu0
  %v482 = vadd.f32 %v102, %v481
  %v483 = vpop.f32.mrb[0].mxu0
  %v484 = vpop.f32.mrb[0].mxu0
  %v485 = vadd.f32 %v102, %v484
  %v486 = vpop.f32.mrb[0].mxu0
  %487 = vmatprep.mubr.bf16.mxu0 %v213
  %488 = vmatmul.mubr.bf16.gmra.mrb[0].mxu0 %v212
  %v489 = vpop.f32.mrb[0].mxu0
  %v490 = vadd.f32 %v102, %v489
  %v491 = vpop.f32.mrb[0].mxu0
  %v492 = vpop.f32.mrb[0].mxu0
  %v493 = vadd.f32 %v102, %v492
  %v494 = vpop.f32.mrb[0].mxu0
  %495 = vmatprep.mubr.bf16.mxu0 %v217
  %496 = vmatmul.mubr.bf16.gmra.mrb[0].mxu0 %v216
  %v497 = vpop.f32.mrb[0].mxu0
  %v498 = vadd.f32 %v102, %v497
  %v499 = vpop.f32.mrb[0].mxu0
  %v500 = vpop.f32.mrb[0].mxu0
  %v501 = vadd.f32 %v102, %v500
  %v502 = vpop.f32.mrb[0].mxu0
  %503 = vmatprep.mubr.bf16.mxu0 %v221
  %504 = vmatmul.mubr.bf16.gmra.mrb[0].mxu0 %v220
  %v505 = vpop.f32.mrb[0].mxu0
  %v506 = vadd.f32 %v102, %v505
  %v507 = vpop.f32.mrb[0].mxu0
  %v508 = vpop.f32.mrb[0].mxu0
  %v509 = vadd.f32 %v102, %v508
  %v510 = vpop.f32.mrb[0].mxu0
  %511 = vmatprep.mubr.bf16.mxu0 %v225
  %512 = vmatmul.mubr.bf16.gmra.mrb[0].mxu0 %v224
  %v513 = vpop.f32.mrb[0].mxu0
  %v514 = vadd.f32 %v102, %v513
  %v515 = vpop.f32.mrb[0].mxu0
  %v516 = vpop.f32.mrb[0].mxu0
  %v517 = vadd.f32 %v102, %v516
  %v518 = vpop.f32.mrb[0].mxu0
  %519 = vmatprep.mubr.bf16.mxu0 %v229
  %520 = vmatmul.mubr.bf16.gmra.mrb[0].mxu0 %v228
  %v521 = vpop.f32.mrb[0].mxu0
  %v522 = vadd.f32 %v102, %v521
  %v523 = vpop.f32.mrb[0].mxu0
  %v524 = vpop.f32.mrb[0].mxu0
  %v525 = vadd.f32 %v102, %v524
  %v526 = vpop.f32.mrb[0].mxu0
  %527 = vdwg.mxu0
  %528 = vmatprep.subr.bf16.mxu0 0
  %529 = vmatpush1.bf16.msra.mxu0 %v372
  %530 = vmatprep.subr.bf16.mxu0 0
  %531 = vmatpush1.bf16.msra.mxu0 %v373
  %532 = vmatprep.subr.bf16.mxu0 0
  %533 = vmatpush1.bf16.msra.mxu0 %v374
  %534 = vmatprep.subr.bf16.mxu0 0
  %535 = vmatpush1.bf16.msra.mxu0 %v375
  %536 = vmatprep.subr.bf16.mxu0 0
  %537 = vmatpush1.bf16.msra.mxu0 %v376
  %538 = vmatprep.subr.bf16.mxu0 0
  %539 = vmatpush1.bf16.msra.mxu0 %v377
  %540 = vmatprep.subr.bf16.mxu0 0
  %541 = vmatpush1.bf16.msra.mxu0 %v378
  %542 = vmatprep.subr.bf16.mxu0 0
  %543 = vmatpush1.bf16.msra.mxu0 %v379
  %544 = vmatprep.subr.bf16.mxu0 0
  %545 = vmatpush1.bf16.msra.mxu0 %v380
  %546 = vmatprep.subr.bf16.mxu0 0
  %547 = vmatpush1.bf16.msra.mxu0 0
  %548 = vmatprep.subr.bf16.mxu0 0
  %549 = vmatpush1.bf16.msra.mxu0 0
  %550 = vmatprep.subr.bf16.mxu0 0
  %551 = vmatpush1.bf16.msra.mxu0 0
  %552 = vmatprep.subr.bf16.mxu0 0
  %553 = vmatpush1.bf16.msra.mxu0 0
  %554 = vmatprep.subr.bf16.mxu0 0
  %555 = vmatpush1.bf16.msra.mxu0 0
  %556 = vmatprep.subr.bf16.mxu0 0
  %557 = vmatpush1.bf16.msra.mxu0 0
  %558 = vmatprep.subr.bf16.mxu0 0
  %559 = vmatpush1.bf16.msra.mxu0 0
  %560 = vmatprep.mubr.bf16.mxu0 %v408
  %561 = vmatmul.mubr.bf16.gmra.mrb[0].mxu0 %v202
  %v562 = vpop.f32.mrb[0].mxu0
  %v563 = vadd.f32 %v466, %v562
  %v564 = vpop.f32.mrb[0].mxu0
  %v565 = vpop.f32.mrb[0].mxu0
  %v566 = vadd.f32 %v469, %v565
  %v567 = vpop.f32.mrb[0].mxu0
  %568 = vmatprep.mubr.bf16.mxu0 %v411
  %569 = vmatmul.mubr.bf16.gmra.mrb[0].mxu0 %v206
  %v570 = vpop.f32.mrb[0].mxu0
  %v571 = vadd.f32 %v474, %v570
  %v572 = vpop.f32.mrb[0].mxu0
  %v573 = vpop.f32.mrb[0].mxu0
  %v574 = vadd.f32 %v477, %v573
  %v575 = vpop.f32.mrb[0].mxu0
  %576 = vmatprep.mubr.bf16.mxu0 %v414
  %577 = vmatmul.mubr.bf16.gmra.mrb[0].mxu0 %v210
  %v578 = vpop.f32.mrb[0].mxu0
  %v579 = vadd.f32 %v482, %v578
  %v580 = vpop.f32.mrb[0].mxu0
  %v581 = vpop.f32.mrb[0].mxu0
  %v582 = vadd.f32 %v485, %v581
  %v583 = vpop.f32.mrb[0].mxu0
  %584 = vmatprep.mubr.bf16.mxu0 %v417
  %585 = vmatmul.mubr.bf16.gmra.mrb[0].mxu0 %v214
  %v586 = vpop.f32.mrb[0].mxu0
  %v587 = vadd.f32 %v490, %v586
  %v588 = vpop.f32.mrb[0].mxu0
  %v589 = vpop.f32.mrb[0].mxu0
  %v590 = vadd.f32 %v493, %v589
  %v591 = vpop.f32.mrb[0].mxu0
  %592 = vmatprep.mubr.bf16.mxu0 %v420
  %593 = vmatmul.mubr.bf16.gmra.mrb[0].mxu0 %v218
  %v594 = vpop.f32.mrb[0].mxu0
  %v595 = vadd.f32 %v498, %v594
  %v596 = vpop.f32.mrb[0].mxu0
  %v597 = vpop.f32.mrb[0].mxu0
  %v598 = vadd.f32 %v501, %v597
  %v599 = vpop.f32.mrb[0].mxu0
  %600 = vmatprep.mubr.bf16.mxu0 %v423
  %601 = vmatmul.mubr.bf16.gmra.mrb[0].mxu0 %v222
  %v602 = vpop.f32.mrb[0].mxu0
  %v603 = vadd.f32 %v506, %v602
  %v604 = vpop.f32.mrb[0].mxu0
  %v605 = vpop.f32.mrb[0].mxu0
  %v606 = vadd.f32 %v509, %v605
  %v607 = vpop.f32.mrb[0].mxu0
  %608 = vmatprep.mubr.bf16.mxu0 %v426
  %609 = vmatmul.mubr.bf16.gmra.mrb[0].mxu0 %v226
  %v610 = vpop.f32.mrb[0].mxu0
  %v611 = vadd.f32 %v514, %v610
  %v612 = vpop.f32.mrb[0].mxu0
  %v613 = vpop.f32.mrb[0].mxu0
  %v614 = vadd.f32 %v517, %v613
  %v615 = vpop.f32.mrb[0].mxu0
  %616 = vmatprep.mubr.bf16.mxu0 %v429
  %617 = vmatmul.mubr.bf16.gmra.mrb[0].mxu0 %v230
  %v618 = vpop.f32.mrb[0].mxu0
  %v619 = vadd.f32 %v522, %v618
  %v620 = vpop.f32.mrb[0].mxu0
  %v621 = vpop.f32.mrb[0].mxu0
  %v622 = vadd.f32 %v525, %v621
  %v623 = vpop.f32.mrb[0].mxu0
  %624 = vdwg.mxu0
  %v625 = vmax.f32 %v563, 0.0
  %v626 = vmax.f32 %v566, 0.0
  %v627 = vmax.f32 %v571, 0.0
  %v628 = vmax.f32 %v574, 0.0
  %v629 = vmax.f32 %v579, 0.0
  %v630 = vmax.f32 %v582, 0.0
  %v631 = vmax.f32 %v587, 0.0
  %v632 = vmax.f32 %v590, 0.0
  %v633 = vmax.f32 %v595, 0.0
  %v634 = vmax.f32 %v598, 0.0
  %v635 = vmax.f32 %v603, 0.0
  %v636 = vmax.f32 %v606, 0.0
  %v637 = vmax.f32 %v611, 0.0
  %v638 = vmax.f32 %v614, 0.0
  %v639 = vmax.f32 %v619, 0.0
  %v640 = vmax.f32 %v622, 0.0
  %v641 = vpack.c.bf16 %v626, %v625
  %v642 = vpack.c.bf16 %v628, %v627
  %v643 = vpack.c.bf16 %v630, %v629
  %v644 = vpack.c.bf16 %v632, %v631
  %v645 = vpack.c.bf16 %v634, %v633
  %v646 = vpack.c.bf16 %v636, %v635
  %v647 = vpack.c.bf16 %v638, %v637
  %v648 = vpack.c.bf16 %v640, %v639
  %v657 = vunpack.c.l.b16 %v641
  %v658 = vunpack.c.h.b16 %v641
  %v659 = vunpack.c.l.b16 %v642
  %v660 = vunpack.c.h.b16 %v642
  %v661 = vunpack.c.l.b16 %v643
  %v662 = vunpack.c.h.b16 %v643
  %v663 = vunpack.c.l.b16 %v644
  %v664 = vunpack.c.h.b16 %v644
  %v665 = vunpack.c.l.b16 %v645
  %v666 = vunpack.c.h.b16 %v645
  %v667 = vunpack.c.l.b16 %v646
  %v668 = vunpack.c.h.b16 %v646
  %v669 = vunpack.c.l.b16 %v647
  %v670 = vunpack.c.h.b16 %v647
  %v671 = vunpack.c.l.b16 %v648
  %v672 = vunpack.c.h.b16 %v648
  %v673 = vpack.c.b16 %v657, %v657
  %v674 = vpack.c.b16 %v658, %v658
  %v675 = vpack.c.b16 %v659, %v659
  %v676 = vpack.c.b16 %v660, %v660
  %v677 = vpack.c.b16 %v661, %v661
  %v678 = vpack.c.b16 %v662, %v662
  %v679 = vpack.c.b16 %v663, %v663
  %v680 = vpack.c.b16 %v664, %v664
  %v681 = vpack.c.b16 %v665, %v665
  %v682 = vpack.c.b16 %v666, %v666
  %v683 = vpack.c.b16 %v667, %v667
  %v684 = vpack.c.b16 %v668, %v668
  %v685 = vpack.c.b16 %v669, %v669
  %v686 = vpack.c.b16 %v670, %v670
  %v687 = vpack.c.b16 %v671, %v671
  %v688 = vpack.c.b16 %v672, %v672
  %705 = vst [vmem:[%s3] sm:$0xf] %v673
  %706 = vst [vmem:[%s3 + $0x4] sm:$0xf] %v674
  %707 = vst [vmem:[%s3 + $0x8] sm:$0xf] %v675
  %708 = vst [vmem:[%s3 + $0xc] sm:$0xf] %v676
  %709 = vst [vmem:[%s3 + $0x10] sm:$0xf] %v677
  %710 = vst [vmem:[%s3 + $0x14] sm:$0xf] %v678
  %711 = vst [vmem:[%s3 + $0x18] sm:$0xf] %v679
  %712 = vst [vmem:[%s3 + $0x1c] sm:$0xf] %v680
  %713 = vst [vmem:[%s3 + $0x20] sm:$0xf] %v681
  %714 = vst [vmem:[%s3 + $0x24] sm:$0xf] %v682
  %715 = vst [vmem:[%s3 + $0x28] sm:$0xf] %v683
  %716 = vst [vmem:[%s3 + $0x2c] sm:$0xf] %v684
  %717 = vst [vmem:[%s3 + $0x30] sm:$0xf] %v685
  %718 = vst [vmem:[%s3 + $0x34] sm:$0xf] %v686
  %719 = vst [vmem:[%s3 + $0x38] sm:$0xf] %v687
  %720 = vst [vmem:[%s3 + $0x3c] sm:$0xf] %v688
  // Predicated region
  $region14: #{motion_compensation.15} parent=0 // pred_check
    _
  $region15: #{motion_compensation.15} parent=0 // pred_check_branch
    %722 = sbr.rel (0) target = $region17
  $region16: #{motion_compensation.15} parent=0 // pred_region
    _
  $region17: #{motion_compensation.15} parent=0 // pred_fallthru
    _
  // Predicated region
  $region18: #{motion_compensation.15} parent=0 // pred_check
    _
  $region19: #{motion_compensation.15} parent=0 // pred_check_branch
    %724 = sbr.rel (0) target = $region21
  $region20: #{motion_compensation.15} parent=0 // pred_region
    _
  $region21: #{motion_compensation.15} parent=0 // pred_fallthru
    _

</llo_original>
